<compile_context>
chip_gen: v7x
topology: tpu7x:2x2x1
jax: 0.10.0
libtpu: 0.0.40
codegen_flags: <defaults>
</compile_context>

<pallas_src>
import functools

import jax
import jax.numpy as jnp
import numpy as np
from jax.experimental import pallas as pl
from jax.experimental.pallas import tpu as pltpu

_HP = jax.lax.Precision.HIGHEST  # used only by the pure-JAX reference


def _bilinear_matrix(in_size: int, out_size: int) -> jnp.ndarray:
    """Row-stochastic (out_size, in_size) matrix for 1-D bilinear resize,
    align_corners=True (matches nn.Upsample(mode='bilinear', align_corners=True))."""
    assert out_size > 1 and in_size > 1
    o = jnp.arange(out_size, dtype=jnp.float32)
    src = o * (in_size - 1) / (out_size - 1)
    i0 = jnp.clip(jnp.floor(src).astype(jnp.int32), 0, in_size - 1)
    i1 = jnp.clip(i0 + 1, 0, in_size - 1)
    frac = src - i0.astype(jnp.float32)
    rows = jnp.arange(out_size)
    u = jnp.zeros((out_size, in_size), jnp.float32)
    u = u.at[rows, i0].add(1.0 - frac)
    u = u.at[rows, i1].add(frac)
    return u


def _up_double_conv_kernel(x1_ref, x2_ref, ut_ref, valid_ref,
                           w1_ref, b1_ref, s1_ref, t1_ref,
                           w2_ref, b2_ref, s2_ref, t2_ref,
                           out_ref,
                           pad1_ref, slab1_ref, pad2_ref, slab2_ref,
                           *, W2):
    f32 = jnp.float32
    C1 = x1_ref.shape[1]
    C2 = x2_ref.shape[1]
    HW = x2_ref.shape[2]          # flattened H2*W2 (lane axis)
    Cin = C1 + C2
    PAD = W2 + 1                  # flat-domain halo: covers tap offsets dy*W2+dx

    # ---- bilinear 2x upsample: single lane-dense matmul (C1, HWin) @ (HWin, HW) ----
    up = jnp.dot(x1_ref[0], ut_ref[...], preferred_element_type=f32)        # (C1, HW)

    # ---- concat([x2, up], channel axis) realized by writing both into the flat-padded
    #      conv-1 input scratch; the halo lanes are never zeroed, taps reading them are
    #      masked by `valid` below. ----
    pad1_ref[0:C2, PAD:PAD + HW] = x2_ref[0]
    pad1_ref[C2:Cin, PAD:PAD + HW] = up

    def im2col(pad_ref, slab_ref, c):
        # Build the (9*c, HW) im2col slab: tap (dy, dx) is a lane-offset window of the
        # flat-padded input, with out-of-image positions zeroed via the precomputed mask.
        ti = 0
        for dy in (-1, 0, 1):
            for dx in (-1, 0, 1):
                start = PAD + dy * W2 + dx                      # static python int
                patch = pad_ref[:, start:start + HW]            # (c, HW) lane window
                m = valid_ref[ti:ti + 1, :] != 0                # (1, HW) tap validity
                slab_ref[ti * c:(ti + 1) * c, :] = jnp.where(m, patch, 0.0)
                ti += 1

    # ---- conv1 (3x3, pad=1): one (Cmid, 9*Cin) @ (9*Cin, HW) matmul ----
    im2col(pad1_ref, slab1_ref, Cin)
    h = jnp.dot(w1_ref[...], slab1_ref[...], preferred_element_type=f32)    # (Cmid, HW)
    h = jnp.maximum(h + b1_ref[...], 0.0)        # bias + ReLU
    h = h * s1_ref[...] + t1_ref[...]            # BatchNorm (inference, folded)
    # Dropout(p=0.2) is the identity at inference time.

    # ---- conv2 (3x3, pad=1): one (Cout, 9*Cmid) @ (9*Cmid, HW) matmul ----
    pad2_ref[:, PAD:PAD + HW] = h
    im2col(pad2_ref, slab2_ref, h.shape[0])
    y = jnp.dot(w2_ref[...], slab2_ref[...], preferred_element_type=f32)    # (Cout, HW)
    y = jnp.maximum(y + b2_ref[...], 0.0)        # bias + ReLU
    y = y * s2_ref[...] + t2_ref[...]            # BatchNorm (inference, folded)

    out_ref[0] = y.astype(out_ref.dtype)


def _bn_fold(gamma, beta, mean, var, eps=1e-5):
    scale = gamma / jnp.sqrt(var + eps)
    shift = beta - mean * scale
    return scale, shift


def up_forward(x1, x2, p):
    """Pallas implementation of Up.forward(x1, x2). NCHW in / NCHW out."""
    B, C1, H, W = x1.shape
    B2, C2, H2, W2 = x2.shape
    assert B == B2
    # TODO(synk): general F.pad offset when x2 spatial != 2 * x1 spatial (odd sizes).
    assert H2 == 2 * H and W2 == 2 * W, "only the exact 2x-upsample case is implemented"

    HW_in, HW = H * W, H2 * W2
    Cin = C1 + C2
    Cmid = p["w1"].shape[0]
    Cout = p["w2"].shape[0]

    # Combined 2-D bilinear (align_corners=True) interpolation matrix, pre-transposed so
    # the kernel does  up = x1_flat @ UT  with a lane-dense (HW) output.
    u_h = _bilinear_matrix(H, H2)                                    # (H2, H)
    u_w = _bilinear_matrix(W, W2)                                    # (W2, W)
    ut = jnp.einsum("oh,pw->hwop", u_h, u_w).reshape(HW_in, HW).astype(jnp.float32)

    # PyTorch conv weight (O, I, 3, 3) -> im2col weight (O, 9*I), taps (ky,kx) row-major,
    # input channel innermost (matches the slab layout built in the kernel).
    w1f = jnp.transpose(p["w1"], (0, 2, 3, 1)).reshape(Cmid, 9 * Cin).astype(jnp.float32)
    w2f = jnp.transpose(p["w2"], (0, 2, 3, 1)).reshape(Cout, 9 * Cmid).astype(jnp.float32)
    s1, t1 = _bn_fold(p["g1"], p["be1"], p["m1"], p["v1"])
    s2, t2 = _bn_fold(p["g2"], p["be2"], p["m2"], p["v2"])
    col = lambda v: v.reshape(-1, 1).astype(jnp.float32)

    # Per-tap validity masks over the flattened spatial axis (host-precomputed).
    hh = np.arange(H2)[:, None]
    ww = np.arange(W2)[None, :]
    masks = []
    for dy in (-1, 0, 1):
        for dx in (-1, 0, 1):
            m = (hh + dy >= 0) & (hh + dy < H2) & (ww + dx >= 0) & (ww + dx < W2)
            masks.append(m.reshape(-1))
    valid = jnp.asarray(np.stack(masks).astype(np.int32))            # (9, HW)

    # Lane-dense flattened activations.
    x1f = x1.reshape(B, C1, HW_in).astype(jnp.float32)
    x2f = x2.reshape(B, C2, HW).astype(jnp.float32)

    const2 = lambda shape: pl.BlockSpec(shape, lambda b: (0, 0))     # constant-index blocks

    grid_spec = pltpu.PrefetchScalarGridSpec(
        num_scalar_prefetch=0,
        grid=(B,),
        in_specs=[
            pl.BlockSpec((1, C1, HW_in), lambda b: (b, 0, 0)),
            pl.BlockSpec((1, C2, HW), lambda b: (b, 0, 0)),
            const2((HW_in, HW)),          # upsample matrix
            const2((9, HW)),              # tap validity masks
            const2((Cmid, 9 * Cin)),      # conv1 weights (im2col)
            const2((Cmid, 1)), const2((Cmid, 1)), const2((Cmid, 1)),
            const2((Cout, 9 * Cmid)),     # conv2 weights (im2col)
            const2((Cout, 1)), const2((Cout, 1)), const2((Cout, 1)),
        ],
        out_specs=pl.BlockSpec((1, Cout, HW), lambda b: (b, 0, 0)),
        scratch_shapes=[
            pltpu.VMEM((Cin, HW + 2 * (W2 + 1)), jnp.float32),   # flat-padded conv1 input
            pltpu.VMEM((9 * Cin, HW), jnp.float32),              # conv1 im2col slab
            pltpu.VMEM((Cmid, HW + 2 * (W2 + 1)), jnp.float32),  # flat-padded conv2 input
            pltpu.VMEM((9 * Cmid, HW), jnp.float32),             # conv2 im2col slab
        ],
    )

    out_flat = pl.pallas_call(
        functools.partial(_up_double_conv_kernel, W2=W2),
        out_shape=jax.ShapeDtypeStruct((B, Cout, HW), jnp.float32),
        grid_spec=grid_spec,
        compiler_params=pltpu.CompilerParams(dimension_semantics=("parallel",)),
    )(x1f, x2f, ut, valid,
      w1f, col(p["b1"]), col(s1), col(t1),
      w2f, col(p["b2"]), col(s2), col(t2))

    return out_flat.reshape(B, Cout, H2, W2)


def init_params(key, in_channels, out_channels):
    """Deterministic synthetic parameters matching Up(in_ch, out_ch, bilinear=True)."""
    mid = in_channels // 2
    ks = jax.random.split(key, 12)
    f = jnp.float32
    return {
        "w1": 0.1 * jax.random.normal(ks[0], (mid, in_channels, 3, 3), f),
        "b1": 0.1 * jax.random.normal(ks[1], (mid,), f),
        "g1": 1.0 + 0.1 * jax.random.normal(ks[2], (mid,), f),
        "be1": 0.1 * jax.random.normal(ks[3], (mid,), f),
        "m1": 0.1 * jax.random.normal(ks[4], (mid,), f),
        "v1": 0.5 + jax.random.uniform(ks[5], (mid,), f),
        "w2": 0.1 * jax.random.normal(ks[6], (out_channels, mid, 3, 3), f),
        "b2": 0.1 * jax.random.normal(ks[7], (out_channels,), f),
        "g2": 1.0 + 0.1 * jax.random.normal(ks[8], (out_channels,), f),
        "be2": 0.1 * jax.random.normal(ks[9], (out_channels,), f),
        "m2": 0.1 * jax.random.normal(ks[10], (out_channels,), f),
        "v2": 0.5 + jax.random.uniform(ks[11], (out_channels,), f),
    }


def reference_forward(x1, x2, p):
    """Plain-JAX reference mirroring Up.forward (eval mode), full f32 precision."""
    u_h = _bilinear_matrix(x1.shape[2], x2.shape[2])
    u_w = _bilinear_matrix(x1.shape[3], x2.shape[3])
    up = jnp.einsum("oh,bchw,pw->bcop", u_h, x1, u_w, precision=_HP)
    x = jnp.concatenate([x2, up], axis=1)

    def conv(z, w, b):
        y = jax.lax.conv_general_dilated(
            z, w, (1, 1), ((1, 1), (1, 1)),
            dimension_numbers=("NCHW", "OIHW", "NCHW"), precision=_HP)
        return y + b.reshape(1, -1, 1, 1)

    def bn(z, g, be, m, v):
        s, t = _bn_fold(g, be, m, v)
        return z * s.reshape(1, -1, 1, 1) + t.reshape(1, -1, 1, 1)

    h = jnp.maximum(conv(x, p["w1"], p["b1"]), 0.0)
    h = bn(h, p["g1"], p["be1"], p["m1"], p["v1"])
    y = jnp.maximum(conv(h, p["w2"], p["b2"]), 0.0)
    y = bn(y, p["g2"], p["be2"], p["m2"], p["v2"])
    return y


if __name__ == "__main__":
    key = jax.random.PRNGKey(0)
    k1, k2, k3 = jax.random.split(key, 3)

    in_channels, out_channels = 8, 4        # Up(8, 4, bilinear=True)
    B, H, W = 2, 8, 8
    x1 = jax.random.normal(k1, (B, in_channels // 2, H, W), jnp.float32)
    x2 = jax.random.normal(k2, (B, in_channels // 2, 2 * H, 2 * W), jnp.float32)
    params = init_params(k3, in_channels, out_channels)

    out = up_forward(x1, x2, params)
    out = jax.block_until_ready(out)

    ref = reference_forward(x1, x2, params)
    # Kernel matmuls use default MXU precision (bf16 inputs, f32 accumulation), the
    # reference is full f32, so compare with a bf16-appropriate tolerance.
    np.testing.assert_allclose(np.asarray(out), np.asarray(ref), rtol=2e-2, atol=2e-2)

    print("KERNEL_OK")
</pallas_src>

<mosaic_0001>
module attributes {stable_mosaic.version = 11 : i64} {
  func.func @_up_double_conv_kernel(%arg0: i32, %arg1: memref<1x4x64xf32, #tpu.memory_space<vmem>>, %arg2: memref<1x4x256xf32, #tpu.memory_space<vmem>>, %arg3: memref<64x256xf32, #tpu.memory_space<vmem>>, %arg4: memref<9x256xi32, #tpu.memory_space<vmem>>, %arg5: memref<4x72xf32, #tpu.memory_space<vmem>>, %arg6: memref<4x1xf32, #tpu.memory_space<vmem>>, %arg7: memref<4x1xf32, #tpu.memory_space<vmem>>, %arg8: memref<4x1xf32, #tpu.memory_space<vmem>>, %arg9: memref<4x36xf32, #tpu.memory_space<vmem>>, %arg10: memref<4x1xf32, #tpu.memory_space<vmem>>, %arg11: memref<4x1xf32, #tpu.memory_space<vmem>>, %arg12: memref<4x1xf32, #tpu.memory_space<vmem>>, %arg13: memref<1x4x256xf32, #tpu.memory_space<vmem>>, %arg14: memref<8x290xf32, #tpu.memory_space<vmem>>, %arg15: memref<72x256xf32, #tpu.memory_space<vmem>>, %arg16: memref<4x290xf32, #tpu.memory_space<vmem>>, %arg17: memref<36x256xf32, #tpu.memory_space<vmem>>) attributes {dimension_semantics = [#tpu.dimension_semantics<parallel>], iteration_bounds = array<i64: 2>, scalar_prefetch = 0 : i64, scratch_operands = 4 : i64, tpu.core_type = #tpu.core_type<tc>, window_params = [{transform_indices = @transform_0, window_bounds = array<i64: 1, 4, 64>}, {transform_indices = @transform_1, window_bounds = array<i64: 1, 4, 256>}, {pipeline_mode = #tpu.pipeline_mode<synchronous>, transform_indices = @transform_2, window_bounds = array<i64: 64, 256>}, {pipeline_mode = #tpu.pipeline_mode<synchronous>, transform_indices = @transform_3, window_bounds = array<i64: 9, 256>}, {pipeline_mode = #tpu.pipeline_mode<synchronous>, transform_indices = @transform_4, window_bounds = array<i64: 4, 72>}, {pipeline_mode = #tpu.pipeline_mode<synchronous>, transform_indices = @transform_5, window_bounds = array<i64: 4, 1>}, {pipeline_mode = #tpu.pipeline_mode<synchronous>, transform_indices = @transform_6, window_bounds = array<i64: 4, 1>}, {pipeline_mode = #tpu.pipeline_mode<synchronous>, transform_indices = @transform_7, window_bounds = array<i64: 4, 1>}, {pipeline_mode = #tpu.pipeline_mode<synchronous>, transform_indices = @transform_8, window_bounds = array<i64: 4, 36>}, {pipeline_mode = #tpu.pipeline_mode<synchronous>, transform_indices = @transform_9, window_bounds = array<i64: 4, 1>}, {pipeline_mode = #tpu.pipeline_mode<synchronous>, transform_indices = @transform_10, window_bounds = array<i64: 4, 1>}, {pipeline_mode = #tpu.pipeline_mode<synchronous>, transform_indices = @transform_11, window_bounds = array<i64: 4, 1>}, {transform_indices = @transform_12, window_bounds = array<i64: 1, 4, 256>}]} {
    %c0 = arith.constant 0 : index
    %c0_0 = arith.constant 0 : index
    %c0_1 = arith.constant 0 : index
    %0 = vector.load %arg1[%c0, %c0_0, %c0_1] : memref<1x4x64xf32, #tpu.memory_space<vmem>>, vector<1x4x64xf32>
    %1 = vector.shape_cast %0 : vector<1x4x64xf32> to vector<4x64xf32>
    %c0_2 = arith.constant 0 : index
    %c0_3 = arith.constant 0 : index
    %2 = vector.load %arg3[%c0_2, %c0_3] : memref<64x256xf32, #tpu.memory_space<vmem>>, vector<64x256xf32>
    %cst = arith.constant dense<0.000000e+00> : vector<4x256xf32>
    %3 = tpu.matmul %1, %2, %cst {dimension_numbers = #tpu.dot_dimension_numbers<[1], [0], [0], [1], [0, 0, 1, 1], [], []>} : vector<4x64xf32>, vector<64x256xf32>, vector<4x256xf32> -> vector<4x256xf32>
    %c0_4 = arith.constant 0 : index
    %c0_5 = arith.constant 0 : index
    %c0_6 = arith.constant 0 : index
    %4 = vector.load %arg2[%c0_4, %c0_5, %c0_6] : memref<1x4x256xf32, #tpu.memory_space<vmem>>, vector<1x4x256xf32>
    %5 = vector.shape_cast %4 : vector<1x4x256xf32> to vector<4x256xf32>
    %c0_7 = arith.constant 0 : index
    %c17 = arith.constant 17 : index
    %6 = vector.load %arg14[%c0_7, %c17] : memref<8x290xf32, #tpu.memory_space<vmem>>, vector<4x256xf32>
    tpu.vector_store %arg14[%c0_7, %c17], %5 {strides = array<i32>} : memref<8x290xf32, #tpu.memory_space<vmem>>, vector<4x256xf32>,
    %c4 = arith.constant 4 : index
    %c17_8 = arith.constant 17 : index
    %7 = vector.load %arg14[%c4, %c17_8] : memref<8x290xf32, #tpu.memory_space<vmem>>, vector<4x256xf32>
    tpu.vector_store %arg14[%c4, %c17_8], %3 {strides = array<i32>} : memref<8x290xf32, #tpu.memory_space<vmem>>, vector<4x256xf32>,
    %c0_9 = arith.constant 0 : index
    %c0_10 = arith.constant 0 : index
    %8 = vector.load %arg14[%c0_9, %c0_10] : memref<8x290xf32, #tpu.memory_space<vmem>>, vector<8x256xf32>
    %c0_11 = arith.constant 0 : index
    %c0_12 = arith.constant 0 : index
    %9 = vector.load %arg4[%c0_11, %c0_12] : memref<9x256xi32, #tpu.memory_space<vmem>>, vector<1x256xi32>
    %c0_i32 = arith.constant 0 : i32
    %10 = vector.broadcast %c0_i32 : i32 to vector<1x256xi32>
    %11 = arith.cmpi ne, %9, %10 : vector<1x256xi32>
    %cst_13 = arith.constant 0.000000e+00 : f32
    %12 = vector.shape_cast %11 : vector<1x256xi1> to vector<1x256xi1>
    %13 = vector.broadcast %12 : vector<1x256xi1> to vector<8x256xi1>
    %14 = vector.broadcast %cst_13 : f32 to vector<8x256xf32>
    %15 = arith.select %13, %8, %14 : vector<8x256xi1>, vector<8x256xf32>
    %c0_14 = arith.constant 0 : index
    %c0_15 = arith.constant 0 : index
    %16 = vector.load %arg15[%c0_14, %c0_15] : memref<72x256xf32, #tpu.memory_space<vmem>>, vector<8x256xf32>
    tpu.vector_store %arg15[%c0_14, %c0_15], %15 {strides = array<i32>} : memref<72x256xf32, #tpu.memory_space<vmem>>, vector<8x256xf32>,
    %c0_16 = arith.constant 0 : index
    %c1 = arith.constant 1 : index
    %17 = vector.load %arg14[%c0_16, %c1] : memref<8x290xf32, #tpu.memory_space<vmem>>, vector<8x256xf32>
    %c1_17 = arith.constant 1 : index
    %c0_18 = arith.constant 0 : index
    %18 = vector.load %arg4[%c1_17, %c0_18] : memref<9x256xi32, #tpu.memory_space<vmem>>, vector<1x256xi32>
    %c0_i32_19 = arith.constant 0 : i32
    %19 = vector.broadcast %c0_i32_19 : i32 to vector<1x256xi32>
    %20 = arith.cmpi ne, %18, %19 : vector<1x256xi32>
    %cst_20 = arith.constant 0.000000e+00 : f32
    %21 = vector.shape_cast %20 : vector<1x256xi1> to vector<1x256xi1>
    %22 = vector.broadcast %21 : vector<1x256xi1> to vector<8x256xi1>
    %23 = vector.broadcast %cst_20 : f32 to vector<8x256xf32>
    %24 = arith.select %22, %17, %23 : vector<8x256xi1>, vector<8x256xf32>
    %c8 = arith.constant 8 : index
    %c0_21 = arith.constant 0 : index
    %25 = vector.load %arg15[%c8, %c0_21] : memref<72x256xf32, #tpu.memory_space<vmem>>, vector<8x256xf32>
    tpu.vector_store %arg15[%c8, %c0_21], %24 {strides = array<i32>} : memref<72x256xf32, #tpu.memory_space<vmem>>, vector<8x256xf32>,
    %c0_22 = arith.constant 0 : index
    %c2 = arith.constant 2 : index
    %26 = vector.load %arg14[%c0_22, %c2] : memref<8x290xf32, #tpu.memory_space<vmem>>, vector<8x256xf32>
    %c2_23 = arith.constant 2 : index
    %c0_24 = arith.constant 0 : index
    %27 = vector.load %arg4[%c2_23, %c0_24] : memref<9x256xi32, #tpu.memory_space<vmem>>, vector<1x256xi32>
    %c0_i32_25 = arith.constant 0 : i32
    %28 = vector.broadcast %c0_i32_25 : i32 to vector<1x256xi32>
    %29 = arith.cmpi ne, %27, %28 : vector<1x256xi32>
    %cst_26 = arith.constant 0.000000e+00 : f32
    %30 = vector.shape_cast %29 : vector<1x256xi1> to vector<1x256xi1>
    %31 = vector.broadcast %30 : vector<1x256xi1> to vector<8x256xi1>
    %32 = vector.broadcast %cst_26 : f32 to vector<8x256xf32>
    %33 = arith.select %31, %26, %32 : vector<8x256xi1>, vector<8x256xf32>
    %c16 = arith.constant 16 : index
    %c0_27 = arith.constant 0 : index
    %34 = vector.load %arg15[%c16, %c0_27] : memref<72x256xf32, #tpu.memory_space<vmem>>, vector<8x256xf32>
    tpu.vector_store %arg15[%c16, %c0_27], %33 {strides = array<i32>} : memref<72x256xf32, #tpu.memory_space<vmem>>, vector<8x256xf32>,
    %c0_28 = arith.constant 0 : index
    %c16_29 = arith.constant 16 : index
    %35 = vector.load %arg14[%c0_28, %c16_29] : memref<8x290xf32, #tpu.memory_space<vmem>>, vector<8x256xf32>
    %c3 = arith.constant 3 : index
    %c0_30 = arith.constant 0 : index
    %36 = vector.load %arg4[%c3, %c0_30] : memref<9x256xi32, #tpu.memory_space<vmem>>, vector<1x256xi32>
    %c0_i32_31 = arith.constant 0 : i32
    %37 = vector.broadcast %c0_i32_31 : i32 to vector<1x256xi32>
    %38 = arith.cmpi ne, %36, %37 : vector<1x256xi32>
    %cst_32 = arith.constant 0.000000e+00 : f32
    %39 = vector.shape_cast %38 : vector<1x256xi1> to vector<1x256xi1>
    %40 = vector.broadcast %39 : vector<1x256xi1> to vector<8x256xi1>
    %41 = vector.broadcast %cst_32 : f32 to vector<8x256xf32>
    %42 = arith.select %40, %35, %41 : vector<8x256xi1>, vector<8x256xf32>
    %c24 = arith.constant 24 : index
    %c0_33 = arith.constant 0 : index
    %43 = vector.load %arg15[%c24, %c0_33] : memref<72x256xf32, #tpu.memory_space<vmem>>, vector<8x256xf32>
    tpu.vector_store %arg15[%c24, %c0_33], %42 {strides = array<i32>} : memref<72x256xf32, #tpu.memory_space<vmem>>, vector<8x256xf32>,
    %c0_34 = arith.constant 0 : index
    %c17_35 = arith.constant 17 : index
    %44 = vector.load %arg14[%c0_34, %c17_35] : memref<8x290xf32, #tpu.memory_space<vmem>>, vector<8x256xf32>
    %c4_36 = arith.constant 4 : index
    %c0_37 = arith.constant 0 : index
    %45 = vector.load %arg4[%c4_36, %c0_37] : memref<9x256xi32, #tpu.memory_space<vmem>>, vector<1x256xi32>
    %c0_i32_38 = arith.constant 0 : i32
    %46 = vector.broadcast %c0_i32_38 : i32 to vector<1x256xi32>
    %47 = arith.cmpi ne, %45, %46 : vector<1x256xi32>
    %cst_39 = arith.constant 0.000000e+00 : f32
    %48 = vector.shape_cast %47 : vector<1x256xi1> to vector<1x256xi1>
    %49 = vector.broadcast %48 : vector<1x256xi1> to vector<8x256xi1>
    %50 = vector.broadcast %cst_39 : f32 to vector<8x256xf32>
    %51 = arith.select %49, %44, %50 : vector<8x256xi1>, vector<8x256xf32>
    %c32 = arith.constant 32 : index
    %c0_40 = arith.constant 0 : index
    %52 = vector.load %arg15[%c32, %c0_40] : memref<72x256xf32, #tpu.memory_space<vmem>>, vector<8x256xf32>
    tpu.vector_store %arg15[%c32, %c0_40], %51 {strides = array<i32>} : memref<72x256xf32, #tpu.memory_space<vmem>>, vector<8x256xf32>,
    %c0_41 = arith.constant 0 : index
    %c18 = arith.constant 18 : index
    %53 = vector.load %arg14[%c0_41, %c18] : memref<8x290xf32, #tpu.memory_space<vmem>>, vector<8x256xf32>
    %c5 = arith.constant 5 : index
    %c0_42 = arith.constant 0 : index
    %54 = vector.load %arg4[%c5, %c0_42] : memref<9x256xi32, #tpu.memory_space<vmem>>, vector<1x256xi32>
    %c0_i32_43 = arith.constant 0 : i32
    %55 = vector.broadcast %c0_i32_43 : i32 to vector<1x256xi32>
    %56 = arith.cmpi ne, %54, %55 : vector<1x256xi32>
    %cst_44 = arith.constant 0.000000e+00 : f32
    %57 = vector.shape_cast %56 : vector<1x256xi1> to vector<1x256xi1>
    %58 = vector.broadcast %57 : vector<1x256xi1> to vector<8x256xi1>
    %59 = vector.broadcast %cst_44 : f32 to vector<8x256xf32>
    %60 = arith.select %58, %53, %59 : vector<8x256xi1>, vector<8x256xf32>
    %c40 = arith.constant 40 : index
    %c0_45 = arith.constant 0 : index
    %61 = vector.load %arg15[%c40, %c0_45] : memref<72x256xf32, #tpu.memory_space<vmem>>, vector<8x256xf32>
    tpu.vector_store %arg15[%c40, %c0_45], %60 {strides = array<i32>} : memref<72x256xf32, #tpu.memory_space<vmem>>, vector<8x256xf32>,
    %c0_46 = arith.constant 0 : index
    %c32_47 = arith.constant 32 : index
    %62 = vector.load %arg14[%c0_46, %c32_47] : memref<8x290xf32, #tpu.memory_space<vmem>>, vector<8x256xf32>
    %c6 = arith.constant 6 : index
    %c0_48 = arith.constant 0 : index
    %63 = vector.load %arg4[%c6, %c0_48] : memref<9x256xi32, #tpu.memory_space<vmem>>, vector<1x256xi32>
    %c0_i32_49 = arith.constant 0 : i32
    %64 = vector.broadcast %c0_i32_49 : i32 to vector<1x256xi32>
    %65 = arith.cmpi ne, %63, %64 : vector<1x256xi32>
    %cst_50 = arith.constant 0.000000e+00 : f32
    %66 = vector.shape_cast %65 : vector<1x256xi1> to vector<1x256xi1>
    %67 = vector.broadcast %66 : vector<1x256xi1> to vector<8x256xi1>
    %68 = vector.broadcast %cst_50 : f32 to vector<8x256xf32>
    %69 = arith.select %67, %62, %68 : vector<8x256xi1>, vector<8x256xf32>
    %c48 = arith.constant 48 : index
    %c0_51 = arith.constant 0 : index
    %70 = vector.load %arg15[%c48, %c0_51] : memref<72x256xf32, #tpu.memory_space<vmem>>, vector<8x256xf32>
    tpu.vector_store %arg15[%c48, %c0_51], %69 {strides = array<i32>} : memref<72x256xf32, #tpu.memory_space<vmem>>, vector<8x256xf32>,
    %c0_52 = arith.constant 0 : index
    %c33 = arith.constant 33 : index
    %71 = vector.load %arg14[%c0_52, %c33] : memref<8x290xf32, #tpu.memory_space<vmem>>, vector<8x256xf32>
    %c7 = arith.constant 7 : index
    %c0_53 = arith.constant 0 : index
    %72 = vector.load %arg4[%c7, %c0_53] : memref<9x256xi32, #tpu.memory_space<vmem>>, vector<1x256xi32>
    %c0_i32_54 = arith.constant 0 : i32
    %73 = vector.broadcast %c0_i32_54 : i32 to vector<1x256xi32>
    %74 = arith.cmpi ne, %72, %73 : vector<1x256xi32>
    %cst_55 = arith.constant 0.000000e+00 : f32
    %75 = vector.shape_cast %74 : vector<1x256xi1> to vector<1x256xi1>
    %76 = vector.broadcast %75 : vector<1x256xi1> to vector<8x256xi1>
    %77 = vector.broadcast %cst_55 : f32 to vector<8x256xf32>
    %78 = arith.select %76, %71, %77 : vector<8x256xi1>, vector<8x256xf32>
    %c56 = arith.constant 56 : index
    %c0_56 = arith.constant 0 : index
    %79 = vector.load %arg15[%c56, %c0_56] : memref<72x256xf32, #tpu.memory_space<vmem>>, vector<8x256xf32>
    tpu.vector_store %arg15[%c56, %c0_56], %78 {strides = array<i32>} : memref<72x256xf32, #tpu.memory_space<vmem>>, vector<8x256xf32>,
    %c0_57 = arith.constant 0 : index
    %c34 = arith.constant 34 : index
    %80 = vector.load %arg14[%c0_57, %c34] : memref<8x290xf32, #tpu.memory_space<vmem>>, vector<8x256xf32>
    %c8_58 = arith.constant 8 : index
    %c0_59 = arith.constant 0 : index
    %81 = vector.load %arg4[%c8_58, %c0_59] : memref<9x256xi32, #tpu.memory_space<vmem>>, vector<1x256xi32>
    %c0_i32_60 = arith.constant 0 : i32
    %82 = vector.broadcast %c0_i32_60 : i32 to vector<1x256xi32>
    %83 = arith.cmpi ne, %81, %82 : vector<1x256xi32>
    %cst_61 = arith.constant 0.000000e+00 : f32
    %84 = vector.shape_cast %83 : vector<1x256xi1> to vector<1x256xi1>
    %85 = vector.broadcast %84 : vector<1x256xi1> to vector<8x256xi1>
    %86 = vector.broadcast %cst_61 : f32 to vector<8x256xf32>
    %87 = arith.select %85, %80, %86 : vector<8x256xi1>, vector<8x256xf32>
    %c64 = arith.constant 64 : index
    %c0_62 = arith.constant 0 : index
    %88 = vector.load %arg15[%c64, %c0_62] : memref<72x256xf32, #tpu.memory_space<vmem>>, vector<8x256xf32>
    tpu.vector_store %arg15[%c64, %c0_62], %87 {strides = array<i32>} : memref<72x256xf32, #tpu.memory_space<vmem>>, vector<8x256xf32>,
    %c0_63 = arith.constant 0 : index
    %c0_64 = arith.constant 0 : index
    %89 = vector.load %arg5[%c0_63, %c0_64] : memref<4x72xf32, #tpu.memory_space<vmem>>, vector<4x72xf32>
    %c0_65 = arith.constant 0 : index
    %c0_66 = arith.constant 0 : index
    %90 = vector.load %arg15[%c0_65, %c0_66] : memref<72x256xf32, #tpu.memory_space<vmem>>, vector<72x256xf32>
    %cst_67 = arith.constant dense<0.000000e+00> : vector<4x256xf32>
    %91 = tpu.matmul %89, %90, %cst_67 {dimension_numbers = #tpu.dot_dimension_numbers<[1], [0], [0], [1], [0, 0, 1, 1], [], []>} : vector<4x72xf32>, vector<72x256xf32>, vector<4x256xf32> -> vector<4x256xf32>
    %c0_68 = arith.constant 0 : index
    %c0_69 = arith.constant 0 : index
    %92 = vector.load %arg6[%c0_68, %c0_69] : memref<4x1xf32, #tpu.memory_space<vmem>>, vector<4x1xf32>
    %93 = vector.broadcast %92 : vector<4x1xf32> to vector<4x256xf32>
    %94 = arith.addf %91, %93 : vector<4x256xf32>
    %cst_70 = arith.constant 0.000000e+00 : f32
    %95 = vector.broadcast %cst_70 : f32 to vector<4x256xf32>
    %96 = arith.maximumf %94, %95 : vector<4x256xf32>
    %c0_71 = arith.constant 0 : index
    %c0_72 = arith.constant 0 : index
    %97 = vector.load %arg7[%c0_71, %c0_72] : memref<4x1xf32, #tpu.memory_space<vmem>>, vector<4x1xf32>
    %98 = vector.broadcast %97 : vector<4x1xf32> to vector<4x256xf32>
    %99 = arith.mulf %96, %98 : vector<4x256xf32>
    %c0_73 = arith.constant 0 : index
    %c0_74 = arith.constant 0 : index
    %100 = vector.load %arg8[%c0_73, %c0_74] : memref<4x1xf32, #tpu.memory_space<vmem>>, vector<4x1xf32>
    %101 = vector.broadcast %100 : vector<4x1xf32> to vector<4x256xf32>
    %102 = arith.addf %99, %101 : vector<4x256xf32>
    %c0_75 = arith.constant 0 : index
    %c17_76 = arith.constant 17 : index
    %103 = vector.load %arg16[%c0_75, %c17_76] : memref<4x290xf32, #tpu.memory_space<vmem>>, vector<4x256xf32>
    tpu.vector_store %arg16[%c0_75, %c17_76], %102 {strides = array<i32>} : memref<4x290xf32, #tpu.memory_space<vmem>>, vector<4x256xf32>,
    %c0_77 = arith.constant 0 : index
    %c0_78 = arith.constant 0 : index
    %104 = vector.load %arg16[%c0_77, %c0_78] : memref<4x290xf32, #tpu.memory_space<vmem>>, vector<4x256xf32>
    %c0_79 = arith.constant 0 : index
    %c0_80 = arith.constant 0 : index
    %105 = vector.load %arg4[%c0_79, %c0_80] : memref<9x256xi32, #tpu.memory_space<vmem>>, vector<1x256xi32>
    %c0_i32_81 = arith.constant 0 : i32
    %106 = vector.broadcast %c0_i32_81 : i32 to vector<1x256xi32>
    %107 = arith.cmpi ne, %105, %106 : vector<1x256xi32>
    %cst_82 = arith.constant 0.000000e+00 : f32
    %108 = vector.shape_cast %107 : vector<1x256xi1> to vector<1x256xi1>
    %109 = vector.broadcast %108 : vector<1x256xi1> to vector<4x256xi1>
    %110 = vector.broadcast %cst_82 : f32 to vector<4x256xf32>
    %111 = arith.select %109, %104, %110 : vector<4x256xi1>, vector<4x256xf32>
    %c0_83 = arith.constant 0 : index
    %c0_84 = arith.constant 0 : index
    %112 = vector.load %arg17[%c0_83, %c0_84] : memref<36x256xf32, #tpu.memory_space<vmem>>, vector<4x256xf32>
    tpu.vector_store %arg17[%c0_83, %c0_84], %111 {strides = array<i32>} : memref<36x256xf32, #tpu.memory_space<vmem>>, vector<4x256xf32>,
    %c0_85 = arith.constant 0 : index
    %c1_86 = arith.constant 1 : index
    %113 = vector.load %arg16[%c0_85, %c1_86] : memref<4x290xf32, #tpu.memory_space<vmem>>, vector<4x256xf32>
    %c1_87 = arith.constant 1 : index
    %c0_88 = arith.constant 0 : index
    %114 = vector.load %arg4[%c1_87, %c0_88] : memref<9x256xi32, #tpu.memory_space<vmem>>, vector<1x256xi32>
    %c0_i32_89 = arith.constant 0 : i32
    %115 = vector.broadcast %c0_i32_89 : i32 to vector<1x256xi32>
    %116 = arith.cmpi ne, %114, %115 : vector<1x256xi32>
    %cst_90 = arith.constant 0.000000e+00 : f32
    %117 = vector.shape_cast %116 : vector<1x256xi1> to vector<1x256xi1>
    %118 = vector.broadcast %117 : vector<1x256xi1> to vector<4x256xi1>
    %119 = vector.broadcast %cst_90 : f32 to vector<4x256xf32>
    %120 = arith.select %118, %113, %119 : vector<4x256xi1>, vector<4x256xf32>
    %c4_91 = arith.constant 4 : index
    %c0_92 = arith.constant 0 : index
    %121 = vector.load %arg17[%c4_91, %c0_92] : memref<36x256xf32, #tpu.memory_space<vmem>>, vector<4x256xf32>
    tpu.vector_store %arg17[%c4_91, %c0_92], %120 {strides = array<i32>} : memref<36x256xf32, #tpu.memory_space<vmem>>, vector<4x256xf32>,
    %c0_93 = arith.constant 0 : index
    %c2_94 = arith.constant 2 : index
    %122 = vector.load %arg16[%c0_93, %c2_94] : memref<4x290xf32, #tpu.memory_space<vmem>>, vector<4x256xf32>
    %c2_95 = arith.constant 2 : index
    %c0_96 = arith.constant 0 : index
    %123 = vector.load %arg4[%c2_95, %c0_96] : memref<9x256xi32, #tpu.memory_space<vmem>>, vector<1x256xi32>
    %c0_i32_97 = arith.constant 0 : i32
    %124 = vector.broadcast %c0_i32_97 : i32 to vector<1x256xi32>
    %125 = arith.cmpi ne, %123, %124 : vector<1x256xi32>
    %cst_98 = arith.constant 0.000000e+00 : f32
    %126 = vector.shape_cast %125 : vector<1x256xi1> to vector<1x256xi1>
    %127 = vector.broadcast %126 : vector<1x256xi1> to vector<4x256xi1>
    %128 = vector.broadcast %cst_98 : f32 to vector<4x256xf32>
    %129 = arith.select %127, %122, %128 : vector<4x256xi1>, vector<4x256xf32>
    %c8_99 = arith.constant 8 : index
    %c0_100 = arith.constant 0 : index
    %130 = vector.load %arg17[%c8_99, %c0_100] : memref<36x256xf32, #tpu.memory_space<vmem>>, vector<4x256xf32>
    tpu.vector_store %arg17[%c8_99, %c0_100], %129 {strides = array<i32>} : memref<36x256xf32, #tpu.memory_space<vmem>>, vector<4x256xf32>,
    %c0_101 = arith.constant 0 : index
    %c16_102 = arith.constant 16 : index
    %131 = vector.load %arg16[%c0_101, %c16_102] : memref<4x290xf32, #tpu.memory_space<vmem>>, vector<4x256xf32>
    %c3_103 = arith.constant 3 : index
    %c0_104 = arith.constant 0 : index
    %132 = vector.load %arg4[%c3_103, %c0_104] : memref<9x256xi32, #tpu.memory_space<vmem>>, vector<1x256xi32>
    %c0_i32_105 = arith.constant 0 : i32
    %133 = vector.broadcast %c0_i32_105 : i32 to vector<1x256xi32>
    %134 = arith.cmpi ne, %132, %133 : vector<1x256xi32>
    %cst_106 = arith.constant 0.000000e+00 : f32
    %135 = vector.shape_cast %134 : vector<1x256xi1> to vector<1x256xi1>
    %136 = vector.broadcast %135 : vector<1x256xi1> to vector<4x256xi1>
    %137 = vector.broadcast %cst_106 : f32 to vector<4x256xf32>
    %138 = arith.select %136, %131, %137 : vector<4x256xi1>, vector<4x256xf32>
    %c12 = arith.constant 12 : index
    %c0_107 = arith.constant 0 : index
    %139 = vector.load %arg17[%c12, %c0_107] : memref<36x256xf32, #tpu.memory_space<vmem>>, vector<4x256xf32>
    tpu.vector_store %arg17[%c12, %c0_107], %138 {strides = array<i32>} : memref<36x256xf32, #tpu.memory_space<vmem>>, vector<4x256xf32>,
    %c0_108 = arith.constant 0 : index
    %c17_109 = arith.constant 17 : index
    %140 = vector.load %arg16[%c0_108, %c17_109] : memref<4x290xf32, #tpu.memory_space<vmem>>, vector<4x256xf32>
    %c4_110 = arith.constant 4 : index
    %c0_111 = arith.constant 0 : index
    %141 = vector.load %arg4[%c4_110, %c0_111] : memref<9x256xi32, #tpu.memory_space<vmem>>, vector<1x256xi32>
    %c0_i32_112 = arith.constant 0 : i32
    %142 = vector.broadcast %c0_i32_112 : i32 to vector<1x256xi32>
    %143 = arith.cmpi ne, %141, %142 : vector<1x256xi32>
    %cst_113 = arith.constant 0.000000e+00 : f32
    %144 = vector.shape_cast %143 : vector<1x256xi1> to vector<1x256xi1>
    %145 = vector.broadcast %144 : vector<1x256xi1> to vector<4x256xi1>
    %146 = vector.broadcast %cst_113 : f32 to vector<4x256xf32>
    %147 = arith.select %145, %140, %146 : vector<4x256xi1>, vector<4x256xf32>
    %c16_114 = arith.constant 16 : index
    %c0_115 = arith.constant 0 : index
    %148 = vector.load %arg17[%c16_114, %c0_115] : memref<36x256xf32, #tpu.memory_space<vmem>>, vector<4x256xf32>
    tpu.vector_store %arg17[%c16_114, %c0_115], %147 {strides = array<i32>} : memref<36x256xf32, #tpu.memory_space<vmem>>, vector<4x256xf32>,
    %c0_116 = arith.constant 0 : index
    %c18_117 = arith.constant 18 : index
    %149 = vector.load %arg16[%c0_116, %c18_117] : memref<4x290xf32, #tpu.memory_space<vmem>>, vector<4x256xf32>
    %c5_118 = arith.constant 5 : index
    %c0_119 = arith.constant 0 : index
    %150 = vector.load %arg4[%c5_118, %c0_119] : memref<9x256xi32, #tpu.memory_space<vmem>>, vector<1x256xi32>
    %c0_i32_120 = arith.constant 0 : i32
    %151 = vector.broadcast %c0_i32_120 : i32 to vector<1x256xi32>
    %152 = arith.cmpi ne, %150, %151 : vector<1x256xi32>
    %cst_121 = arith.constant 0.000000e+00 : f32
    %153 = vector.shape_cast %152 : vector<1x256xi1> to vector<1x256xi1>
    %154 = vector.broadcast %153 : vector<1x256xi1> to vector<4x256xi1>
    %155 = vector.broadcast %cst_121 : f32 to vector<4x256xf32>
    %156 = arith.select %154, %149, %155 : vector<4x256xi1>, vector<4x256xf32>
    %c20 = arith.constant 20 : index
    %c0_122 = arith.constant 0 : index
    %157 = vector.load %arg17[%c20, %c0_122] : memref<36x256xf32, #tpu.memory_space<vmem>>, vector<4x256xf32>
    tpu.vector_store %arg17[%c20, %c0_122], %156 {strides = array<i32>} : memref<36x256xf32, #tpu.memory_space<vmem>>, vector<4x256xf32>,
    %c0_123 = arith.constant 0 : index
    %c32_124 = arith.constant 32 : index
    %158 = vector.load %arg16[%c0_123, %c32_124] : memref<4x290xf32, #tpu.memory_space<vmem>>, vector<4x256xf32>
    %c6_125 = arith.constant 6 : index
    %c0_126 = arith.constant 0 : index
    %159 = vector.load %arg4[%c6_125, %c0_126] : memref<9x256xi32, #tpu.memory_space<vmem>>, vector<1x256xi32>
    %c0_i32_127 = arith.constant 0 : i32
    %160 = vector.broadcast %c0_i32_127 : i32 to vector<1x256xi32>
    %161 = arith.cmpi ne, %159, %160 : vector<1x256xi32>
    %cst_128 = arith.constant 0.000000e+00 : f32
    %162 = vector.shape_cast %161 : vector<1x256xi1> to vector<1x256xi1>
    %163 = vector.broadcast %162 : vector<1x256xi1> to vector<4x256xi1>
    %164 = vector.broadcast %cst_128 : f32 to vector<4x256xf32>
    %165 = arith.select %163, %158, %164 : vector<4x256xi1>, vector<4x256xf32>
    %c24_129 = arith.constant 24 : index
    %c0_130 = arith.constant 0 : index
    %166 = vector.load %arg17[%c24_129, %c0_130] : memref<36x256xf32, #tpu.memory_space<vmem>>, vector<4x256xf32>
    tpu.vector_store %arg17[%c24_129, %c0_130], %165 {strides = array<i32>} : memref<36x256xf32, #tpu.memory_space<vmem>>, vector<4x256xf32>,
    %c0_131 = arith.constant 0 : index
    %c33_132 = arith.constant 33 : index
    %167 = vector.load %arg16[%c0_131, %c33_132] : memref<4x290xf32, #tpu.memory_space<vmem>>, vector<4x256xf32>
    %c7_133 = arith.constant 7 : index
    %c0_134 = arith.constant 0 : index
    %168 = vector.load %arg4[%c7_133, %c0_134] : memref<9x256xi32, #tpu.memory_space<vmem>>, vector<1x256xi32>
    %c0_i32_135 = arith.constant 0 : i32
    %169 = vector.broadcast %c0_i32_135 : i32 to vector<1x256xi32>
    %170 = arith.cmpi ne, %168, %169 : vector<1x256xi32>
    %cst_136 = arith.constant 0.000000e+00 : f32
    %171 = vector.shape_cast %170 : vector<1x256xi1> to vector<1x256xi1>
    %172 = vector.broadcast %171 : vector<1x256xi1> to vector<4x256xi1>
    %173 = vector.broadcast %cst_136 : f32 to vector<4x256xf32>
    %174 = arith.select %172, %167, %173 : vector<4x256xi1>, vector<4x256xf32>
    %c28 = arith.constant 28 : index
    %c0_137 = arith.constant 0 : index
    %175 = vector.load %arg17[%c28, %c0_137] : memref<36x256xf32, #tpu.memory_space<vmem>>, vector<4x256xf32>
    tpu.vector_store %arg17[%c28, %c0_137], %174 {strides = array<i32>} : memref<36x256xf32, #tpu.memory_space<vmem>>, vector<4x256xf32>,
    %c0_138 = arith.constant 0 : index
    %c34_139 = arith.constant 34 : index
    %176 = vector.load %arg16[%c0_138, %c34_139] : memref<4x290xf32, #tpu.memory_space<vmem>>, vector<4x256xf32>
    %c8_140 = arith.constant 8 : index
    %c0_141 = arith.constant 0 : index
    %177 = vector.load %arg4[%c8_140, %c0_141] : memref<9x256xi32, #tpu.memory_space<vmem>>, vector<1x256xi32>
    %c0_i32_142 = arith.constant 0 : i32
    %178 = vector.broadcast %c0_i32_142 : i32 to vector<1x256xi32>
    %179 = arith.cmpi ne, %177, %178 : vector<1x256xi32>
    %cst_143 = arith.constant 0.000000e+00 : f32
    %180 = vector.shape_cast %179 : vector<1x256xi1> to vector<1x256xi1>
    %181 = vector.broadcast %180 : vector<1x256xi1> to vector<4x256xi1>
    %182 = vector.broadcast %cst_143 : f32 to vector<4x256xf32>
    %183 = arith.select %181, %176, %182 : vector<4x256xi1>, vector<4x256xf32>
    %c32_144 = arith.constant 32 : index
    %c0_145 = arith.constant 0 : index
    %184 = vector.load %arg17[%c32_144, %c0_145] : memref<36x256xf32, #tpu.memory_space<vmem>>, vector<4x256xf32>
    tpu.vector_store %arg17[%c32_144, %c0_145], %183 {strides = array<i32>} : memref<36x256xf32, #tpu.memory_space<vmem>>, vector<4x256xf32>,
    %c0_146 = arith.constant 0 : index
    %c0_147 = arith.constant 0 : index
    %185 = vector.load %arg9[%c0_146, %c0_147] : memref<4x36xf32, #tpu.memory_space<vmem>>, vector<4x36xf32>
    %c0_148 = arith.constant 0 : index
    %c0_149 = arith.constant 0 : index
    %186 = vector.load %arg17[%c0_148, %c0_149] : memref<36x256xf32, #tpu.memory_space<vmem>>, vector<36x256xf32>
    %cst_150 = arith.constant dense<0.000000e+00> : vector<4x256xf32>
    %187 = tpu.matmul %185, %186, %cst_150 {dimension_numbers = #tpu.dot_dimension_numbers<[1], [0], [0], [1], [0, 0, 1, 1], [], []>} : vector<4x36xf32>, vector<36x256xf32>, vector<4x256xf32> -> vector<4x256xf32>
    %c0_151 = arith.constant 0 : index
    %c0_152 = arith.constant 0 : index
    %188 = vector.load %arg10[%c0_151, %c0_152] : memref<4x1xf32, #tpu.memory_space<vmem>>, vector<4x1xf32>
    %189 = vector.broadcast %188 : vector<4x1xf32> to vector<4x256xf32>
    %190 = arith.addf %187, %189 : vector<4x256xf32>
    %cst_153 = arith.constant 0.000000e+00 : f32
    %191 = vector.broadcast %cst_153 : f32 to vector<4x256xf32>
    %192 = arith.maximumf %190, %191 : vector<4x256xf32>
    %c0_154 = arith.constant 0 : index
    %c0_155 = arith.constant 0 : index
    %193 = vector.load %arg11[%c0_154, %c0_155] : memref<4x1xf32, #tpu.memory_space<vmem>>, vector<4x1xf32>
    %194 = vector.broadcast %193 : vector<4x1xf32> to vector<4x256xf32>
    %195 = arith.mulf %192, %194 : vector<4x256xf32>
    %c0_156 = arith.constant 0 : index
    %c0_157 = arith.constant 0 : index
    %196 = vector.load %arg12[%c0_156, %c0_157] : memref<4x1xf32, #tpu.memory_space<vmem>>, vector<4x1xf32>
    %197 = vector.broadcast %196 : vector<4x1xf32> to vector<4x256xf32>
    %198 = arith.addf %195, %197 : vector<4x256xf32>
    %c0_158 = arith.constant 0 : index
    %c0_159 = arith.constant 0 : index
    %c0_160 = arith.constant 0 : index
    %199 = vector.load %arg13[%c0_158, %c0_159, %c0_160] : memref<1x4x256xf32, #tpu.memory_space<vmem>>, vector<1x4x256xf32>
    %200 = vector.shape_cast %199 : vector<1x4x256xf32> to vector<4x256xf32>
    %201 = vector.shape_cast %198 : vector<4x256xf32> to vector<1x4x256xf32>
    tpu.vector_store %arg13[%c0_158, %c0_159, %c0_160], %201 {strides = array<i32>} : memref<1x4x256xf32, #tpu.memory_space<vmem>>, vector<1x4x256xf32>,
    return
  }
  func.func @transform_0(%arg0: i32) -> (i32, i32, i32) {
    %c0_i32 = arith.constant 0 : i32
    %c0_i32_0 = arith.constant 0 : i32
    %c0_i32_1 = arith.constant 0 : i32
    return %arg0, %c0_i32, %c0_i32_0 : i32, i32, i32
  }
  func.func @transform_1(%arg0: i32) -> (i32, i32, i32) {
    %c0_i32 = arith.constant 0 : i32
    %c0_i32_0 = arith.constant 0 : i32
    %c0_i32_1 = arith.constant 0 : i32
    return %arg0, %c0_i32, %c0_i32_0 : i32, i32, i32
  }
  func.func @transform_2(%arg0: i32) -> (i32, i32) {
    %c0_i32 = arith.constant 0 : i32
    %c0_i32_0 = arith.constant 0 : i32
    %c0_i32_1 = arith.constant 0 : i32
    return %c0_i32, %c0_i32_0 : i32, i32
  }
  func.func @transform_3(%arg0: i32) -> (i32, i32) {
    %c0_i32 = arith.constant 0 : i32
    %c0_i32_0 = arith.constant 0 : i32
    %c0_i32_1 = arith.constant 0 : i32
    return %c0_i32, %c0_i32_0 : i32, i32
  }
  func.func @transform_4(%arg0: i32) -> (i32, i32) {
    %c0_i32 = arith.constant 0 : i32
    %c0_i32_0 = arith.constant 0 : i32
    %c0_i32_1 = arith.constant 0 : i32
    return %c0_i32, %c0_i32_0 : i32, i32
  }
  func.func @transform_5(%arg0: i32) -> (i32, i32) {
    %c0_i32 = arith.constant 0 : i32
    %c0_i32_0 = arith.constant 0 : i32
    %c0_i32_1 = arith.constant 0 : i32
    return %c0_i32, %c0_i32_0 : i32, i32
  }
  func.func @transform_6(%arg0: i32) -> (i32, i32) {
    %c0_i32 = arith.constant 0 : i32
    %c0_i32_0 = arith.constant 0 : i32
    %c0_i32_1 = arith.constant 0 : i32
    return %c0_i32, %c0_i32_0 : i32, i32
  }
  func.func @transform_7(%arg0: i32) -> (i32, i32) {
    %c0_i32 = arith.constant 0 : i32
    %c0_i32_0 = arith.constant 0 : i32
    %c0_i32_1 = arith.constant 0 : i32
    return %c0_i32, %c0_i32_0 : i32, i32
  }
  func.func @transform_8(%arg0: i32) -> (i32, i32) {
    %c0_i32 = arith.constant 0 : i32
    %c0_i32_0 = arith.constant 0 : i32
    %c0_i32_1 = arith.constant 0 : i32
    return %c0_i32, %c0_i32_0 : i32, i32
  }
  func.func @transform_9(%arg0: i32) -> (i32, i32) {
    %c0_i32 = arith.constant 0 : i32
    %c0_i32_0 = arith.constant 0 : i32
    %c0_i32_1 = arith.constant 0 : i32
    return %c0_i32, %c0_i32_0 : i32, i32
  }
  func.func @transform_10(%arg0: i32) -> (i32, i32) {
    %c0_i32 = arith.constant 0 : i32
    %c0_i32_0 = arith.constant 0 : i32
    %c0_i32_1 = arith.constant 0 : i32
    return %c0_i32, %c0_i32_0 : i32, i32
  }
  func.func @transform_11(%arg0: i32) -> (i32, i32) {
    %c0_i32 = arith.constant 0 : i32
    %c0_i32_0 = arith.constant 0 : i32
    %c0_i32_1 = arith.constant 0 : i32
    return %c0_i32, %c0_i32_0 : i32, i32
  }
  func.func @transform_12(%arg0: i32) -> (i32, i32, i32) {
    %c0_i32 = arith.constant 0 : i32
    %c0_i32_0 = arith.constant 0 : i32
    %c0_i32_1 = arith.constant 0 : i32
    return %arg0, %c0_i32, %c0_i32_0 : i32, i32, i32
  }
}

</mosaic_0001>

<llo_original>
// kernel: tpu_custom_call.1
$region0: #{tpu_custom_call.1}
  #allocation0 [shape = 'u32[]', space=smem, size = 0x4, offset = 0x4, fixed_abs, tag = 'smem constant byte address 0x4 - core index']
  #allocation1 [shape = 'u32[144,128]{1,0:T(1,128)}', space=vmem, size = 0x12000, scoped, tag = 'internal scratch']
  #allocation2 [shape = 'f32[8,290]{1,0:T(8,128)}', space=vmem, size = 0x3000, scoped, tag = 'scratch operand']
  #allocation3 [shape = 'f32[72,256]{1,0:T(8,128)}', space=vmem, size = 0x12000, scoped, tag = 'scratch operand']
  #allocation4 [shape = 'f32[4,290]{1,0:T(4,128)}', space=vmem, size = 0x1800, scoped, tag = 'scratch operand']
  #allocation5 [shape = 'f32[36,256]{1,0:T(8,128)}', space=vmem, size = 0xa000, scoped, tag = 'scratch operand']
  %s0 = inlined_call_operand.vmem [shape: f32[2,4,64], index: 0, kind: input, shape index: {}]
  %s1 = inlined_call_operand.hbm [shape: f32[2,4,256], index: 1, kind: input, shape index: {}]
  %s2 = inlined_call_operand.hbm [shape: f32[64,256], index: 2, kind: input, shape index: {}]
  %s3 = inlined_call_operand.vmem [shape: s32[9,256], index: 3, kind: input, shape index: {}]
  %s4 = inlined_call_operand.vmem [shape: f32[4,72], index: 4, kind: input, shape index: {}]
  %s5 = inlined_call_operand.vmem [shape: f32[4,1], index: 5, kind: input, shape index: {}]
  %s6 = inlined_call_operand.vmem [shape: f32[4,1], index: 6, kind: input, shape index: {}]
  %s7 = inlined_call_operand.vmem [shape: f32[4,1], index: 7, kind: input, shape index: {}]
  %s8 = inlined_call_operand.vmem [shape: f32[4,36], index: 8, kind: input, shape index: {}]
  %s9 = inlined_call_operand.vmem [shape: f32[4,1], index: 9, kind: input, shape index: {}]
  %s10 = inlined_call_operand.vmem [shape: f32[4,1], index: 10, kind: input, shape index: {}]
  %s11 = inlined_call_operand.vmem [shape: f32[4,1], index: 11, kind: input, shape index: {}]
  %s12 = inlined_call_operand.hbm [shape: f32[2,4,256], index: 12, kind: output, shape index: {}]
  %s13 = sld [smem:[#allocation0]]
  $region89: #{tpu_custom_call.1} parent=0
    _
  %s15 = ssub.s32 1, %s13
  %s16 = scalar_select 0, %s15, %s13
  $region1: #{tpu_custom_call.1} parent=0
    #allocation6 [shape = 'u8[8192]{0}', space=vmem, size = 0x2000, scoped, tag = 'input window, operand 1']
    #allocation7 [shape = 's32[2]{0}', space=sflag, size = 0x8, scoped, tag = 'scoped memory for tpu_custom_call.1']
    #allocation8 [shape = 's32[2]{0}', space=sflag, size = 0x8, scoped, tag = 'scoped memory for tpu_custom_call.1']
    #allocation9 [shape = 'u8[65536]{0}', space=vmem, size = 0x10000, scoped, tag = 'input window, operand 2, single buffered']
    #allocation10 [shape = 's32[1]{0}', space=sflag, size = 0x4, scoped, tag = 'scoped memory for tpu_custom_call.1']
    #allocation11 [shape = 'u8[8192]{0}', space=vmem, size = 0x2000, scoped, tag = 'output window, operand 0']
    %17 = vsyncpa [#allocation7], 0
    %s18 = scalar_lea.sflag [#allocation7], 1
    %19 = vsyncpa %s18, 0
    %20 = vsyncpa [#allocation10], 0
    %21 = vsyncpa [#allocation8], 0
    %s22 = scalar_lea.sflag [#allocation8], 1
    %23 = vsyncpa %s22, 0
    loop: start=0, step=1, limit=4
    $region2: #{tpu_custom_call.1} parent=1 // loop_pre_header
      _
    $region3: #{tpu_custom_call.1} parent=1 // loop_header
      %s25 = sphi 0, %s29
      %p26 = scmp.ge.s32.totalorder %s25, 4
      %s35 = sphi 0, %s37
      %s38 = sphi 0, %s35
      %s39 = sphi 0, %s38
      %s55 = sphi 0, %s39
      %s61 = sphi 0, %s63
      %s64 = sphi 0, %s61
      %s65 = sphi 0, %s64
      %s81 = sphi 0, %s65
      %s85 = sphi 0, %s85
      %s87 = sphi 0, %s85
      %s88 = sphi 0, %s87
      %s102 = sphi 0, %s88
      %s106 = sphi 0, %s106
      %s108 = sphi 0, %s106
      %s109 = sphi 0, %s108
      %s123 = sphi 0, %s109
      %s127 = sphi 0, %s127
      %s129 = sphi 0, %s127
      %s130 = sphi 0, %s129
      %s144 = sphi 0, %s130
      %s148 = sphi 0, %s148
      %s150 = sphi 0, %s148
      %s151 = sphi 0, %s150
      %s165 = sphi 0, %s151
      %s169 = sphi 0, %s169
      %s171 = sphi 0, %s169
      %s172 = sphi 0, %s171
      %s186 = sphi 0, %s172
      %s190 = sphi 0, %s190
      %s192 = sphi 0, %s190
      %s193 = sphi 0, %s192
      %s207 = sphi 0, %s193
      %s211 = sphi 0, %s211
      %s213 = sphi 0, %s211
      %s214 = sphi 0, %s213
      %s228 = sphi 0, %s214
      %s232 = sphi 0, %s232
      %s234 = sphi 0, %s232
      %s235 = sphi 0, %s234
      %s249 = sphi 0, %s235
      %s253 = sphi 0, %s253
      %s255 = sphi 0, %s253
      %s256 = sphi 0, %s255
      %s270 = sphi 0, %s256
      %s274 = sphi 0, %s274
      %s276 = sphi 0, %s274
      %s277 = sphi 0, %s276
      %s291 = sphi 0, %s277
      %s297 = sphi 0, %s299
      %s300 = sphi 0, %s297
      %s301 = sphi 0, %s300
      %s317 = sphi 0, %s301
    $region4: #{tpu_custom_call.1} parent=1 // loop_header_branch
      %28 = sbr.rel (%p26) target = $region8
    $region5: #{tpu_custom_call.1} parent=1 // loop_body
      %s30 = ssub.s32 %s25, 1
      %s31 = ssub.s32 %s25, 2
      %s32 = sadd.s32 %s25, 1
      %s33 = ssub.s32 %s25, %s32
      %p34 = scmp.eq.s32.totalorder %s33, 0
      %s36 = sadd.s32 %s35, 1
      %s37 = scalar_select %p34, %s35, %s36
      %p40 = pneg %p34
      %p41 = scmp.eq.s32.totalorder %s25, 1
      %p42 = por %p40, %p41
      %p43 = scmp.ne.s32.totalorder %s35, %s38
      %p44 = scmp.eq.s32.totalorder %s25, 0
      %p45 = por %p43, %p44
      %p46 = scmp.ne.s32.totalorder %s35, %s38
      %p47 = scmp.eq.s32.totalorder %s30, 1
      %p48 = por %p46, %p47
      %p49 = scmp.ne.s32.totalorder %s38, %s39
      %p50 = scmp.eq.s32.totalorder %s30, 0
      %p51 = por %p49, %p50
      %p52 = scmp.ne.s32.totalorder %s38, %s39
      %p53 = scmp.eq.s32.totalorder %s31, 1
      %p54 = por %p52, %p53
      %p56 = scmp.ne.s32.totalorder %s39, %s55
      %p57 = scmp.eq.s32.totalorder %s31, 0
      %p58 = por %p56, %p57
      %s59 = ssub.s32 %s25, %s32
      %p60 = scmp.eq.s32.totalorder %s59, 0
      %s62 = sadd.s32 %s61, 1
      %s63 = scalar_select %p60, %s61, %s62
      %p66 = pneg %p60
      %p67 = scmp.eq.s32.totalorder %s25, 1
      %p68 = por %p66, %p67
      %p69 = scmp.ne.s32.totalorder %s61, %s64
      %p70 = scmp.eq.s32.totalorder %s25, 0
      %p71 = por %p69, %p70
      %p72 = scmp.ne.s32.totalorder %s61, %s64
      %p73 = scmp.eq.s32.totalorder %s30, 1
      %p74 = por %p72, %p73
      %p75 = scmp.ne.s32.totalorder %s64, %s65
      %p76 = scmp.eq.s32.totalorder %s30, 0
      %p77 = por %p75, %p76
      %p78 = scmp.ne.s32.totalorder %s64, %s65
      %p79 = scmp.eq.s32.totalorder %s31, 1
      %p80 = por %p78, %p79
      %p82 = scmp.ne.s32.totalorder %s65, %s81
      %p83 = scmp.eq.s32.totalorder %s31, 0
      %p84 = por %p82, %p83
      %s86 = sadd.s32 %s85, 1
      %p89 = scmp.eq.s32.totalorder %s25, 1
      %p90 = scmp.ne.s32.totalorder %s85, %s87
      %p91 = scmp.eq.s32.totalorder %s25, 0
      %p92 = por %p90, %p91
      %p93 = scmp.ne.s32.totalorder %s85, %s87
      %p94 = scmp.eq.s32.totalorder %s30, 1
      %p95 = por %p93, %p94
      %p96 = scmp.ne.s32.totalorder %s87, %s88
      %p97 = scmp.eq.s32.totalorder %s30, 0
      %p98 = por %p96, %p97
      %p99 = scmp.ne.s32.totalorder %s87, %s88
      %p100 = scmp.eq.s32.totalorder %s31, 1
      %p101 = por %p99, %p100
      %p103 = scmp.ne.s32.totalorder %s88, %s102
      %p104 = scmp.eq.s32.totalorder %s31, 0
      %p105 = por %p103, %p104
      %s107 = sadd.s32 %s106, 1
      %p110 = scmp.eq.s32.totalorder %s25, 1
      %p111 = scmp.ne.s32.totalorder %s106, %s108
      %p112 = scmp.eq.s32.totalorder %s25, 0
      %p113 = por %p111, %p112
      %p114 = scmp.ne.s32.totalorder %s106, %s108
      %p115 = scmp.eq.s32.totalorder %s30, 1
      %p116 = por %p114, %p115
      %p117 = scmp.ne.s32.totalorder %s108, %s109
      %p118 = scmp.eq.s32.totalorder %s30, 0
      %p119 = por %p117, %p118
      %p120 = scmp.ne.s32.totalorder %s108, %s109
      %p121 = scmp.eq.s32.totalorder %s31, 1
      %p122 = por %p120, %p121
      %p124 = scmp.ne.s32.totalorder %s109, %s123
      %p125 = scmp.eq.s32.totalorder %s31, 0
      %p126 = por %p124, %p125
      %s128 = sadd.s32 %s127, 1
      %p131 = scmp.eq.s32.totalorder %s25, 1
      %p132 = scmp.ne.s32.totalorder %s127, %s129
      %p133 = scmp.eq.s32.totalorder %s25, 0
      %p134 = por %p132, %p133
      %p135 = scmp.ne.s32.totalorder %s127, %s129
      %p136 = scmp.eq.s32.totalorder %s30, 1
      %p137 = por %p135, %p136
      %p138 = scmp.ne.s32.totalorder %s129, %s130
      %p139 = scmp.eq.s32.totalorder %s30, 0
      %p140 = por %p138, %p139
      %p141 = scmp.ne.s32.totalorder %s129, %s130
      %p142 = scmp.eq.s32.totalorder %s31, 1
      %p143 = por %p141, %p142
      %p145 = scmp.ne.s32.totalorder %s130, %s144
      %p146 = scmp.eq.s32.totalorder %s31, 0
      %p147 = por %p145, %p146
      %s149 = sadd.s32 %s148, 1
      %p152 = scmp.eq.s32.totalorder %s25, 1
      %p153 = scmp.ne.s32.totalorder %s148, %s150
      %p154 = scmp.eq.s32.totalorder %s25, 0
      %p155 = por %p153, %p154
      %p156 = scmp.ne.s32.totalorder %s148, %s150
      %p157 = scmp.eq.s32.totalorder %s30, 1
      %p158 = por %p156, %p157
      %p159 = scmp.ne.s32.totalorder %s150, %s151
      %p160 = scmp.eq.s32.totalorder %s30, 0
      %p161 = por %p159, %p160
      %p162 = scmp.ne.s32.totalorder %s150, %s151
      %p163 = scmp.eq.s32.totalorder %s31, 1
      %p164 = por %p162, %p163
      %p166 = scmp.ne.s32.totalorder %s151, %s165
      %p167 = scmp.eq.s32.totalorder %s31, 0
      %p168 = por %p166, %p167
      %s170 = sadd.s32 %s169, 1
      %p173 = scmp.eq.s32.totalorder %s25, 1
      %p174 = scmp.ne.s32.totalorder %s169, %s171
      %p175 = scmp.eq.s32.totalorder %s25, 0
      %p176 = por %p174, %p175
      %p177 = scmp.ne.s32.totalorder %s169, %s171
      %p178 = scmp.eq.s32.totalorder %s30, 1
      %p179 = por %p177, %p178
      %p180 = scmp.ne.s32.totalorder %s171, %s172
      %p181 = scmp.eq.s32.totalorder %s30, 0
      %p182 = por %p180, %p181
      %p183 = scmp.ne.s32.totalorder %s171, %s172
      %p184 = scmp.eq.s32.totalorder %s31, 1
      %p185 = por %p183, %p184
      %p187 = scmp.ne.s32.totalorder %s172, %s186
      %p188 = scmp.eq.s32.totalorder %s31, 0
      %p189 = por %p187, %p188
      %s191 = sadd.s32 %s190, 1
      %p194 = scmp.eq.s32.totalorder %s25, 1
      %p195 = scmp.ne.s32.totalorder %s190, %s192
      %p196 = scmp.eq.s32.totalorder %s25, 0
      %p197 = por %p195, %p196
      %p198 = scmp.ne.s32.totalorder %s190, %s192
      %p199 = scmp.eq.s32.totalorder %s30, 1
      %p200 = por %p198, %p199
      %p201 = scmp.ne.s32.totalorder %s192, %s193
      %p202 = scmp.eq.s32.totalorder %s30, 0
      %p203 = por %p201, %p202
      %p204 = scmp.ne.s32.totalorder %s192, %s193
      %p205 = scmp.eq.s32.totalorder %s31, 1
      %p206 = por %p204, %p205
      %p208 = scmp.ne.s32.totalorder %s193, %s207
      %p209 = scmp.eq.s32.totalorder %s31, 0
      %p210 = por %p208, %p209
      %s212 = sadd.s32 %s211, 1
      %p215 = scmp.eq.s32.totalorder %s25, 1
      %p216 = scmp.ne.s32.totalorder %s211, %s213
      %p217 = scmp.eq.s32.totalorder %s25, 0
      %p218 = por %p216, %p217
      %p219 = scmp.ne.s32.totalorder %s211, %s213
      %p220 = scmp.eq.s32.totalorder %s30, 1
      %p221 = por %p219, %p220
      %p222 = scmp.ne.s32.totalorder %s213, %s214
      %p223 = scmp.eq.s32.totalorder %s30, 0
      %p224 = por %p222, %p223
      %p225 = scmp.ne.s32.totalorder %s213, %s214
      %p226 = scmp.eq.s32.totalorder %s31, 1
      %p227 = por %p225, %p226
      %p229 = scmp.ne.s32.totalorder %s214, %s228
      %p230 = scmp.eq.s32.totalorder %s31, 0
      %p231 = por %p229, %p230
      %s233 = sadd.s32 %s232, 1
      %p236 = scmp.eq.s32.totalorder %s25, 1
      %p237 = scmp.ne.s32.totalorder %s232, %s234
      %p238 = scmp.eq.s32.totalorder %s25, 0
      %p239 = por %p237, %p238
      %p240 = scmp.ne.s32.totalorder %s232, %s234
      %p241 = scmp.eq.s32.totalorder %s30, 1
      %p242 = por %p240, %p241
      %p243 = scmp.ne.s32.totalorder %s234, %s235
      %p244 = scmp.eq.s32.totalorder %s30, 0
      %p245 = por %p243, %p244
      %p246 = scmp.ne.s32.totalorder %s234, %s235
      %p247 = scmp.eq.s32.totalorder %s31, 1
      %p248 = por %p246, %p247
      %p250 = scmp.ne.s32.totalorder %s235, %s249
      %p251 = scmp.eq.s32.totalorder %s31, 0
      %p252 = por %p250, %p251
      %s254 = sadd.s32 %s253, 1
      %p257 = scmp.eq.s32.totalorder %s25, 1
      %p258 = scmp.ne.s32.totalorder %s253, %s255
      %p259 = scmp.eq.s32.totalorder %s25, 0
      %p260 = por %p258, %p259
      %p261 = scmp.ne.s32.totalorder %s253, %s255
      %p262 = scmp.eq.s32.totalorder %s30, 1
      %p263 = por %p261, %p262
      %p264 = scmp.ne.s32.totalorder %s255, %s256
      %p265 = scmp.eq.s32.totalorder %s30, 0
      %p266 = por %p264, %p265
      %p267 = scmp.ne.s32.totalorder %s255, %s256
      %p268 = scmp.eq.s32.totalorder %s31, 1
      %p269 = por %p267, %p268
      %p271 = scmp.ne.s32.totalorder %s256, %s270
      %p272 = scmp.eq.s32.totalorder %s31, 0
      %p273 = por %p271, %p272
      %s275 = sadd.s32 %s274, 1
      %p278 = scmp.eq.s32.totalorder %s25, 1
      %p279 = scmp.ne.s32.totalorder %s274, %s276
      %p280 = scmp.eq.s32.totalorder %s25, 0
      %p281 = por %p279, %p280
      %p282 = scmp.ne.s32.totalorder %s274, %s276
      %p283 = scmp.eq.s32.totalorder %s30, 1
      %p284 = por %p282, %p283
      %p285 = scmp.ne.s32.totalorder %s276, %s277
      %p286 = scmp.eq.s32.totalorder %s30, 0
      %p287 = por %p285, %p286
      %p288 = scmp.ne.s32.totalorder %s276, %s277
      %p289 = scmp.eq.s32.totalorder %s31, 1
      %p290 = por %p288, %p289
      %p292 = scmp.ne.s32.totalorder %s277, %s291
      %p293 = scmp.eq.s32.totalorder %s31, 0
      %p294 = por %p292, %p293
      %s295 = ssub.s32 %s25, %s32
      %p296 = scmp.eq.s32.totalorder %s295, 0
      %s298 = sadd.s32 %s297, 1
      %s299 = scalar_select %p296, %s297, %s298
      %p302 = pneg %p296
      %p303 = scmp.eq.s32.totalorder %s25, 1
      %p304 = por %p302, %p303
      %p305 = scmp.ne.s32.totalorder %s297, %s300
      %p306 = scmp.eq.s32.totalorder %s25, 0
      %p307 = por %p305, %p306
      %p308 = scmp.ne.s32.totalorder %s297, %s300
      %p309 = scmp.eq.s32.totalorder %s30, 1
      %p310 = por %p308, %p309
      %p311 = scmp.ne.s32.totalorder %s300, %s301
      %p312 = scmp.eq.s32.totalorder %s30, 0
      %p313 = por %p311, %p312
      %p314 = scmp.ne.s32.totalorder %s300, %s301
      %p315 = scmp.eq.s32.totalorder %s31, 1
      %p316 = por %p314, %p315
      %p318 = scmp.ne.s32.totalorder %s301, %s317
      %p319 = scmp.eq.s32.totalorder %s31, 0
      %p320 = por %p318, %p319
      %p321 = scmp.le.s32.totalorder 1, %s25
      %p322 = scmp.lt.s32.totalorder %s25, 3
      %p323 = pnand %p321, %p322
      %p324 = pneg %p323
      // Predicated region
      $region9: #{tpu_custom_call.1} parent=5 // pred_check
        _
      $region10: #{tpu_custom_call.1} parent=5 // pred_check_branch
        %326 = sbr.rel (%p323) target = $region12
      $region11: #{tpu_custom_call.1} parent=5 // pred_region
        %s327 = ssub.s32 %s25, 1
        // Predicated region
        $region13: #{tpu_custom_call.1} parent=11 // pred_check
          %p328 = pneg %p98
        $region14: #{tpu_custom_call.1} parent=11 // pred_check_branch
          %330 = sbr.rel (%p328) target = $region16
        $region15: #{tpu_custom_call.1} parent=11 // pred_region
          %s332 = ssub.s32 2048, 2048
          %333 = vsyncadd [#allocation10], %s332
          %s334 = sshll.u32 [#allocation9], 4
          %s335 = int_to_ptr.vmem [resolvable:$true] %s334
          %340 = dma.hbm_to_vmem [thread:$0]  %s2, 2048, %s335, [#allocation10], 256, 256, 16
        $region16: #{tpu_custom_call.1} parent=11 // pred_fallthru
          _
        // Predicated region
        $region17: #{tpu_custom_call.1} parent=11 // pred_check
          %p341 = pneg %p119
        $region18: #{tpu_custom_call.1} parent=11 // pred_check_branch
          %343 = sbr.rel (%p341) target = $region20
        $region19: #{tpu_custom_call.1} parent=11 // pred_region
          _
        $region20: #{tpu_custom_call.1} parent=11 // pred_fallthru
          _
        // Predicated region
        $region21: #{tpu_custom_call.1} parent=11 // pred_check
          %p344 = pneg %p140
        $region22: #{tpu_custom_call.1} parent=11 // pred_check_branch
          %346 = sbr.rel (%p344) target = $region24
        $region23: #{tpu_custom_call.1} parent=11 // pred_region
          _
        $region24: #{tpu_custom_call.1} parent=11 // pred_fallthru
          _
        // Predicated region
        $region25: #{tpu_custom_call.1} parent=11 // pred_check
          %p347 = pneg %p161
        $region26: #{tpu_custom_call.1} parent=11 // pred_check_branch
          %349 = sbr.rel (%p347) target = $region28
        $region27: #{tpu_custom_call.1} parent=11 // pred_region
          _
        $region28: #{tpu_custom_call.1} parent=11 // pred_fallthru
          _
        // Predicated region
        $region29: #{tpu_custom_call.1} parent=11 // pred_check
          %p350 = pneg %p182
        $region30: #{tpu_custom_call.1} parent=11 // pred_check_branch
          %352 = sbr.rel (%p350) target = $region32
        $region31: #{tpu_custom_call.1} parent=11 // pred_region
          _
        $region32: #{tpu_custom_call.1} parent=11 // pred_fallthru
          _
        // Predicated region
        $region33: #{tpu_custom_call.1} parent=11 // pred_check
          %p353 = pneg %p203
        $region34: #{tpu_custom_call.1} parent=11 // pred_check_branch
          %355 = sbr.rel (%p353) target = $region36
        $region35: #{tpu_custom_call.1} parent=11 // pred_region
          _
        $region36: #{tpu_custom_call.1} parent=11 // pred_fallthru
          _
        // Predicated region
        $region37: #{tpu_custom_call.1} parent=11 // pred_check
          %p356 = pneg %p224
        $region38: #{tpu_custom_call.1} parent=11 // pred_check_branch
          %358 = sbr.rel (%p356) target = $region40
        $region39: #{tpu_custom_call.1} parent=11 // pred_region
          _
        $region40: #{tpu_custom_call.1} parent=11 // pred_fallthru
          _
        // Predicated region
        $region41: #{tpu_custom_call.1} parent=11 // pred_check
          %p359 = pneg %p245
        $region42: #{tpu_custom_call.1} parent=11 // pred_check_branch
          %361 = sbr.rel (%p359) target = $region44
        $region43: #{tpu_custom_call.1} parent=11 // pred_region
          _
        $region44: #{tpu_custom_call.1} parent=11 // pred_fallthru
          _
        // Predicated region
        $region45: #{tpu_custom_call.1} parent=11 // pred_check
          %p362 = pneg %p266
        $region46: #{tpu_custom_call.1} parent=11 // pred_check_branch
          %364 = sbr.rel (%p362) target = $region48
        $region47: #{tpu_custom_call.1} parent=11 // pred_region
          _
        $region48: #{tpu_custom_call.1} parent=11 // pred_fallthru
          _
        // Predicated region
        $region49: #{tpu_custom_call.1} parent=11 // pred_check
          %p365 = pneg %p287
        $region50: #{tpu_custom_call.1} parent=11 // pred_check_branch
          %367 = sbr.rel (%p365) target = $region52
        $region51: #{tpu_custom_call.1} parent=11 // pred_region
          _
        $region52: #{tpu_custom_call.1} parent=11 // pred_fallthru
          _
      $region12: #{tpu_custom_call.1} parent=5 // pred_fallthru
        _
      %p368 = scmp.lt.s32.totalorder %s25, 2
      // Predicated region
      $region53: #{tpu_custom_call.1} parent=5 // pred_check
        %p369 = pneg %p368
      $region54: #{tpu_custom_call.1} parent=5 // pred_check_branch
        %371 = sbr.rel (%p369) target = $region56
      $region55: #{tpu_custom_call.1} parent=5 // pred_region
        // Predicated region
        $region57: #{tpu_custom_call.1} parent=55 // pred_check
          %p372 = pneg %p45
        $region58: #{tpu_custom_call.1} parent=55 // pred_check_branch
          %374 = sbr.rel (%p372) target = $region60
        $region59: #{tpu_custom_call.1} parent=55 // pred_region
          %p375 = scmp.lt.s32.totalorder %s25, 1
          %s376 = scalar_select %p375, %s25, 1
          %s377 = smul.addr %s376, 4
          %s378 = scalar_lea.vmem %s0, %s377
        $region60: #{tpu_custom_call.1} parent=55 // pred_fallthru
          _
        // Predicated region
        $region61: #{tpu_custom_call.1} parent=55 // pred_check
          %p379 = pneg %p71
        $region62: #{tpu_custom_call.1} parent=55 // pred_check_branch
          %381 = sbr.rel (%p379) target = $region64
        $region63: #{tpu_custom_call.1} parent=55 // pred_region
          %s382 = sand.u32 %s61, 1
          %s383 = scalar_lea.sflag [#allocation7], %s382
          %s384 = sand.u32 %s61, 1
          %s385 = smul.addr %s384, 8
          %s386 = scalar_lea.vmem [#allocation6], %s385
          %s388 = ssub.s32 128, 128
          %389 = vsyncadd %s383, %s388
          %s390 = smul.addr %s25, 2
          %s391 = smul.addr %s390, 64
          %s392 = scalar_lea.hbm %s1, %s391
          %s394 = sshll.u32 %s386, 4
          %s395 = int_to_ptr.vmem [resolvable:$true] %s394
          %397 = dma.hbm_to_vmem [thread:$0]  %s392, 128, %s395, %s383
        $region64: #{tpu_custom_call.1} parent=55 // pred_fallthru
          _
      $region56: #{tpu_custom_call.1} parent=5 // pred_fallthru
        _
      %p398 = scmp.le.s32.totalorder 1, %s25
      %p399 = scmp.lt.s32.totalorder %s25, 3
      %p400 = pnand %p398, %p399
      %p401 = pneg %p400
      // Predicated region
      $region65: #{tpu_custom_call.1} parent=5 // pred_check
        _
      $region66: #{tpu_custom_call.1} parent=5 // pred_check_branch
        %403 = sbr.rel (%p400) target = $region68
      $region67: #{tpu_custom_call.1} parent=5 // pred_region
        %s404 = ssub.s32 %s25, 1
        %s405 = sand.u32 %s64, 1
        %s406 = scalar_lea.sflag [#allocation7], %s405
        %s407 = sand.u32 %s64, 1
        %s408 = smul.addr %s407, 8
        %s409 = scalar_lea.vmem [#allocation6], %s408
        // Predicated region
        $region69: #{tpu_custom_call.1} parent=67 // pred_check
          %p410 = pneg %p77
        $region70: #{tpu_custom_call.1} parent=67 // pred_check_branch
          %412 = sbr.rel (%p410) target = $region72
        $region71: #{tpu_custom_call.1} parent=67 // pred_region
          %413 = dma.done %s406, 128
        $region72: #{tpu_custom_call.1} parent=67 // pred_fallthru
          _
        // Predicated region
        $region73: #{tpu_custom_call.1} parent=67 // pred_check
          %p414 = pneg %p98
        $region74: #{tpu_custom_call.1} parent=67 // pred_check_branch
          %416 = sbr.rel (%p414) target = $region76
        $region75: #{tpu_custom_call.1} parent=67 // pred_region
          %417 = dma.done [#allocation10], 2048
        $region76: #{tpu_custom_call.1} parent=67 // pred_fallthru
          _
        %p418 = scmp.lt.s32.totalorder %s30, 1
        %s419 = scalar_select %p418, %s30, 1
        %s420 = smul.addr %s419, 4
        %s421 = scalar_lea.vmem %s0, %s420
        %p422 = pneg %p51
        %p423 = pneg %p48
        %s424 = sand.u32 %s64, 1
        %s425 = scalar_lea.sflag [#allocation7], %s424
        %s426 = sand.u32 %s64, 1
        %s427 = smul.addr %s426, 8
        %s428 = scalar_lea.vmem [#allocation6], %s427
        %p429 = pneg %p77
        %p430 = pneg %p74
        %p431 = pneg %p98
        %p432 = pneg %p95
        %p433 = pneg %p119
        %p434 = pneg %p116
        %p435 = pneg %p140
        %p436 = pneg %p137
        %p437 = pneg %p161
        %p438 = pneg %p158
        %p439 = pneg %p182
        %p440 = pneg %p179
        %p441 = pneg %p203
        %p442 = pneg %p200
        %p443 = pneg %p224
        %p444 = pneg %p221
        %p445 = pneg %p245
        %p446 = pneg %p242
        %p447 = pneg %p266
        %p448 = pneg %p263
        %p449 = pneg %p287
        %p450 = pneg %p284
        %p451 = pneg %p313
        %p452 = pneg %p310
        %s453 = sand.u32 %s300, 1
        %s454 = scalar_lea.sflag [#allocation8], %s453
        %s455 = sand.u32 %s300, 1
        %s456 = smul.addr %s455, 8
        %s457 = scalar_lea.vmem [#allocation11], %s456
        %p458 = scmp.lt.s32.totalorder %s30, 1
        %s459 = scalar_select %p458, %s30, 1
        %s460 = smul.addr %s459, 4
        %s461 = scalar_lea.vmem %s0, %s460
        %v462 = vld [vmem:[%s461] sm:$0xf]
        %v463 = vld [vmem:[#allocation9] sm:$0xff]
        %v464 = vld [vmem:[#allocation9 + $0x8] sm:$0xff]
        %v465 = vld [vmem:[#allocation9 + $0x10] sm:$0xff]
        %v466 = vld [vmem:[#allocation9 + $0x18] sm:$0xff]
        %v467 = vld [vmem:[#allocation9 + $0x20] sm:$0xff]
        %v468 = vld [vmem:[#allocation9 + $0x28] sm:$0xff]
        %v469 = vld [vmem:[#allocation9 + $0x30] sm:$0xff]
        %v470 = vld [vmem:[#allocation9 + $0x38] sm:$0xff]
        %v471 = vld [vmem:[#allocation9 + $0x40] sm:$0xff]
        %v472 = vld [vmem:[#allocation9 + $0x48] sm:$0xff]
        %v473 = vld [vmem:[#allocation9 + $0x50] sm:$0xff]
        %v474 = vld [vmem:[#allocation9 + $0x58] sm:$0xff]
        %v475 = vld [vmem:[#allocation9 + $0x60] sm:$0xff]
        %v476 = vld [vmem:[#allocation9 + $0x68] sm:$0xff]
        %v477 = vld [vmem:[#allocation9 + $0x70] sm:$0xff]
        %v478 = vld [vmem:[#allocation9 + $0x78] sm:$0xff]
        %vm479 = vcmask 523264
        %v481 = vsel %vm479, %v462, 0
        %483 = vmatprep.subr.mxu0 %v464
        %484 = vmatpush1.msra.mxu0 %v463
        %485 = vmatprep.subr.mxu0 %v466
        %486 = vmatpush1.msra.mxu0 %v465
        %487 = vmatprep.subr.mxu0 %v468
        %488 = vmatpush1.msra.mxu0 %v467
        %489 = vmatprep.subr.mxu0 %v470
        %490 = vmatpush1.msra.mxu0 %v469
        %491 = vmatprep.subr.mxu0 %v472
        %492 = vmatpush1.msra.mxu0 %v471
        %493 = vmatprep.subr.mxu0 %v474
        %494 = vmatpush1.msra.mxu0 %v473
        %495 = vmatprep.subr.mxu0 %v476
        %496 = vmatpush1.msra.mxu0 %v475
        %497 = vmatprep.subr.mxu0 %v478
        %498 = vmatpush1.msra.mxu0 %v477
        %499 = vmatprep.subr.mxu0 0.0
        %500 = vmatpush1.msra.mxu0 0.0
        %501 = vmatprep.subr.mxu0 0.0
        %502 = vmatpush1.msra.mxu0 0.0
        %503 = vmatprep.subr.mxu0 0.0
        %504 = vmatpush1.msra.mxu0 0.0
        %505 = vmatprep.subr.mxu0 0.0
        %506 = vmatpush1.msra.mxu0 0.0
        %507 = vmatprep.subr.mxu0 0.0
        %508 = vmatpush1.msra.mxu0 0.0
        %509 = vmatprep.subr.mxu0 0.0
        %510 = vmatpush1.msra.mxu0 0.0
        %511 = vmatprep.subr.mxu0 0.0
        %512 = vmatpush1.msra.mxu0 0.0
        %513 = vmatprep.subr.mxu0 0.0
        %514 = vmatpush1.msra.mxu0 0.0
        %515 = vmatprep.subr.mxu0 0.0
        %516 = vmatpush1.msra.mxu0 0.0
        %517 = vmatprep.subr.mxu0 0.0
        %518 = vmatpush1.msra.mxu0 0.0
        %519 = vmatprep.subr.mxu0 0.0
        %520 = vmatpush1.msra.mxu0 0.0
        %521 = vmatprep.subr.mxu0 0.0
        %522 = vmatpush1.msra.mxu0 0.0
        %523 = vmatprep.subr.mxu0 0.0
        %524 = vmatpush1.msra.mxu0 0.0
        %525 = vmatprep.subr.mxu0 0.0
        %526 = vmatpush1.msra.mxu0 0.0
        %527 = vmatprep.subr.mxu0 0.0
        %528 = vmatpush1.msra.mxu0 0.0
        %529 = vmatprep.subr.mxu0 0.0
        %530 = vmatpush1.msra.mxu0 0.0
        %531 = vmatprep.subr.mxu0 0.0
        %532 = vmatpush1.msra.mxu0 0.0
        %533 = vmatprep.subr.mxu0 0.0
        %534 = vmatpush1.msra.mxu0 0.0
        %535 = vmatprep.subr.mxu0 0.0
        %536 = vmatpush1.msra.mxu0 0.0
        %537 = vmatprep.subr.mxu0 0.0
        %538 = vmatpush1.msra.mxu0 0.0
        %539 = vmatprep.subr.mxu0 0.0
        %540 = vmatpush1.msra.mxu0 0.0
        %541 = vmatprep.subr.mxu0 0.0
        %542 = vmatpush1.msra.mxu0 0.0
        %543 = vmatprep.subr.mxu0 0.0
        %544 = vmatpush1.msra.mxu0 0.0
        %545 = vmatprep.subr.mxu0 0.0
        %546 = vmatpush1.msra.mxu0 0.0
        %547 = vmatprep.mubr.f32.mxu0 0.0
        %548 = vmatmul.mubr.f32.gmra.mrb[0].mxu0 %v481
        %v549 = vpop.f32.mrb[0].mxu0
        %v550 = vadd.f32 0.0, %v549
        %v551 = vpop.f32.mrb[0].mxu0
        %v552 = vadd.f32 0.0, %v551
        %553 = vdwg.mxu0
        %v554 = vld [vmem:[%s409] sm:$0xff]
        %v556 = vcombine.high %v554, %v554
        %557 = vrot.lane.b32.xlu0 %v554, 17
        %v558 = vpop.permute.xlu0 %557
        %559 = vrot.lane.b32.xlu0 %v556, 17
        %v560 = vpop.permute.xlu0 %559
        %vm561 = vcmask 138240
        %v562 = vsel %vm561, %v558, %v560
        %vm566 = vcmask 1043592
        %567 = vst.msk [vmem:[#allocation2] sm:$0xf] %vm566, %v558
        %568 = vst [vmem:[#allocation2 + $0x8] sm:$0xf] %v562
        %vm569 = vcmask 134144
        %570 = vst.msk [vmem:[#allocation2 + $0x10] sm:$0xf] %vm569, %v560
        %v573 = vrot.slane %v550, 4
        %v574 = vrot.slane %v552, 4
        %575 = vrot.lane.b32.xlu0 %v573, 17
        %v576 = vpop.permute.xlu0 %575
        %577 = vrot.lane.b32.xlu0 %v574, 17
        %v578 = vpop.permute.xlu0 %577
        %v579 = vsel %vm561, %v576, %v578
        %vm583 = vcmask 1047692
        %584 = vst.msk [vmem:[#allocation2] sm:$0xf0] %vm583, %v576
        %585 = vst [vmem:[#allocation2 + $0x8] sm:$0xf0] %v579
        %vm586 = vcmask 138244
        %587 = vst.msk [vmem:[#allocation2 + $0x10] sm:$0xf0] %vm586, %v578
        %v588 = vld [vmem:[#allocation2] sm:$0xff]
        %v589 = vld [vmem:[#allocation2 + $0x8] sm:$0xff]
        %v590 = vld [vmem:[%s3] ss:$8 sm:$0x3]
        %vm591 = vcmp.ne.s32.totalorder %v590, 0
        %v592 = vsel %vm591, 1, 0
        %v593 = vlaneseq
        %v594 = vshrl.u32 %v593, 7
        %v595 = vsub.s32 0, %v594
        %v596 = vrot.slane %v592, %v595
        %v597 = vlaneseq
        %v598 = vshrl.u32 %v597, 7
        %v599 = vsub.s32 1, %v598
        %v600 = vrot.slane %v592, %v599
        %vm601 = vcmp.eq.s32.totalorder %v596, 1
        %vm602 = vcmp.eq.s32.totalorder %v600, 1
        %v603 = vsel %vm601, %v588, 0.0
        %v604 = vsel %vm602, %v589, 0.0
        %605 = vst [vmem:[#allocation3] sm:$0xff] %v603
        %606 = vst [vmem:[#allocation3 + $0x8] sm:$0xff] %v604
        %v607 = vld [vmem:[#allocation2] sm:$0xff]
        %v608 = vld [vmem:[#allocation2 + $0x8] sm:$0xff]
        %v609 = vld [vmem:[#allocation2 + $0x10] sm:$0xff]
        %s610 = scalar_lea.vmem %s3, 1
        %v611 = vld [vmem:[%s610] ss:$8 sm:$0x3]
        %vm612 = vcmp.ne.s32.totalorder %v611, 0
        %v613 = vsel %vm612, 1, 0
        %v614 = vlaneseq
        %v615 = vshrl.u32 %v614, 7
        %v616 = vsub.s32 0, %v615
        %v617 = vrot.slane %v613, %v616
        %v618 = vlaneseq
        %v619 = vshrl.u32 %v618, 7
        %v620 = vsub.s32 1, %v619
        %v621 = vrot.slane %v613, %v620
        %vm622 = vcmp.eq.s32.totalorder %v617, 1
        %vm623 = vcmp.eq.s32.totalorder %v621, 1
        %627 = vrot.lane.b32.xlu0 %v607, 127
        %v628 = vpop.permute.xlu0 %627
        %629 = vrot.lane.b32.xlu0 %v608, 127
        %v630 = vpop.permute.xlu0 %629
        %631 = vrot.lane.b32.xlu0 %v609, 127
        %v632 = vpop.permute.xlu0 %631
        %vm633 = vcmask 1039360
        %v634 = vsel %vm633, %v628, %v630
        %v635 = vsel %vm633, %v630, %v632
        %v638 = vsel %vm622, %v634, 0.0
        %v639 = vsel %vm623, %v635, 0.0
        %640 = vst [vmem:[#allocation3 + $0x10] sm:$0xff] %v638
        %641 = vst [vmem:[#allocation3 + $0x18] sm:$0xff] %v639
        %v642 = vld [vmem:[#allocation2] sm:$0xff]
        %v643 = vld [vmem:[#allocation2 + $0x8] sm:$0xff]
        %v644 = vld [vmem:[#allocation2 + $0x10] sm:$0xff]
        %s645 = scalar_lea.vmem %s3, 2
        %v646 = vld [vmem:[%s645] ss:$8 sm:$0x3]
        %vm647 = vcmp.ne.s32.totalorder %v646, 0
        %v648 = vsel %vm647, 1, 0
        %v649 = vlaneseq
        %v650 = vshrl.u32 %v649, 7
        %v651 = vsub.s32 0, %v650
        %v652 = vrot.slane %v648, %v651
        %v653 = vlaneseq
        %v654 = vshrl.u32 %v653, 7
        %v655 = vsub.s32 1, %v654
        %v656 = vrot.slane %v648, %v655
        %vm657 = vcmp.eq.s32.totalorder %v652, 1
        %vm658 = vcmp.eq.s32.totalorder %v656, 1
        %662 = vrot.lane.b32.xlu0 %v642, 126
        %v663 = vpop.permute.xlu0 %662
        %664 = vrot.lane.b32.xlu0 %v643, 126
        %v665 = vpop.permute.xlu0 %664
        %666 = vrot.lane.b32.xlu0 %v644, 126
        %v667 = vpop.permute.xlu0 %666
        %vm668 = vcmask 1031168
        %v669 = vsel %vm668, %v663, %v665
        %v670 = vsel %vm668, %v665, %v667
        %v673 = vsel %vm657, %v669, 0.0
        %v674 = vsel %vm658, %v670, 0.0
        %675 = vst [vmem:[#allocation3 + $0x20] sm:$0xff] %v673
        %676 = vst [vmem:[#allocation3 + $0x28] sm:$0xff] %v674
        %v677 = vld [vmem:[#allocation2] sm:$0xff]
        %v678 = vld [vmem:[#allocation2 + $0x8] sm:$0xff]
        %v679 = vld [vmem:[#allocation2 + $0x10] sm:$0xff]
        %s680 = scalar_lea.vmem %s3, 3
        %v681 = vld [vmem:[%s680] ss:$8 sm:$0x3]
        %vm682 = vcmp.ne.s32.totalorder %v681, 0
        %v683 = vsel %vm682, 1, 0
        %v684 = vlaneseq
        %v685 = vshrl.u32 %v684, 7
        %v686 = vsub.s32 0, %v685
        %v687 = vrot.slane %v683, %v686
        %v688 = vlaneseq
        %v689 = vshrl.u32 %v688, 7
        %v690 = vsub.s32 1, %v689
        %v691 = vrot.slane %v683, %v690
        %vm692 = vcmp.eq.s32.totalorder %v687, 1
        %vm693 = vcmp.eq.s32.totalorder %v691, 1
        %697 = vrot.lane.b32.xlu0 %v677, 112
        %v698 = vpop.permute.xlu0 %697
        %699 = vrot.lane.b32.xlu0 %v678, 112
        %v700 = vpop.permute.xlu0 %699
        %701 = vrot.lane.b32.xlu0 %v679, 112
        %v702 = vpop.permute.xlu0 %701
        %vm703 = vcmask 916480
        %v704 = vsel %vm703, %v698, %v700
        %v705 = vsel %vm703, %v700, %v702
        %v708 = vsel %vm692, %v704, 0.0
        %v709 = vsel %vm693, %v705, 0.0
        %710 = vst [vmem:[#allocation3 + $0x30] sm:$0xff] %v708
        %711 = vst [vmem:[#allocation3 + $0x38] sm:$0xff] %v709
        %v712 = vld [vmem:[#allocation2] sm:$0xff]
        %v713 = vld [vmem:[#allocation2 + $0x8] sm:$0xff]
        %v714 = vld [vmem:[#allocation2 + $0x10] sm:$0xff]
        %s715 = scalar_lea.vmem %s3, 4
        %v716 = vld [vmem:[%s715] ss:$8 sm:$0x3]
        %vm717 = vcmp.ne.s32.totalorder %v716, 0
        %v718 = vsel %vm717, 1, 0
        %v719 = vlaneseq
        %v720 = vshrl.u32 %v719, 7
        %v721 = vsub.s32 0, %v720
        %v722 = vrot.slane %v718, %v721
        %v723 = vlaneseq
        %v724 = vshrl.u32 %v723, 7
        %v725 = vsub.s32 1, %v724
        %v726 = vrot.slane %v718, %v725
        %vm727 = vcmp.eq.s32.totalorder %v722, 1
        %vm728 = vcmp.eq.s32.totalorder %v726, 1
        %732 = vrot.lane.b32.xlu0 %v712, 111
        %v733 = vpop.permute.xlu0 %732
        %734 = vrot.lane.b32.xlu0 %v713, 111
        %v735 = vpop.permute.xlu0 %734
        %736 = vrot.lane.b32.xlu0 %v714, 111
        %v737 = vpop.permute.xlu0 %736
        %vm738 = vcmask 908288
        %v739 = vsel %vm738, %v733, %v735
        %v740 = vsel %vm738, %v735, %v737
        %v743 = vsel %vm727, %v739, 0.0
        %v744 = vsel %vm728, %v740, 0.0
        %745 = vst [vmem:[#allocation3 + $0x40] sm:$0xff] %v743
        %746 = vst [vmem:[#allocation3 + $0x48] sm:$0xff] %v744
        %v747 = vld [vmem:[#allocation2] sm:$0xff]
        %v748 = vld [vmem:[#allocation2 + $0x8] sm:$0xff]
        %v749 = vld [vmem:[#allocation2 + $0x10] sm:$0xff]
        %s750 = scalar_lea.vmem %s3, 5
        %v751 = vld [vmem:[%s750] ss:$8 sm:$0x3]
        %vm752 = vcmp.ne.s32.totalorder %v751, 0
        %v753 = vsel %vm752, 1, 0
        %v754 = vlaneseq
        %v755 = vshrl.u32 %v754, 7
        %v756 = vsub.s32 0, %v755
        %v757 = vrot.slane %v753, %v756
        %v758 = vlaneseq
        %v759 = vshrl.u32 %v758, 7
        %v760 = vsub.s32 1, %v759
        %v761 = vrot.slane %v753, %v760
        %vm762 = vcmp.eq.s32.totalorder %v757, 1
        %vm763 = vcmp.eq.s32.totalorder %v761, 1
        %767 = vrot.lane.b32.xlu0 %v747, 110
        %v768 = vpop.permute.xlu0 %767
        %769 = vrot.lane.b32.xlu0 %v748, 110
        %v770 = vpop.permute.xlu0 %769
        %771 = vrot.lane.b32.xlu0 %v749, 110
        %v772 = vpop.permute.xlu0 %771
        %vm773 = vcmask 900096
        %v774 = vsel %vm773, %v768, %v770
        %v775 = vsel %vm773, %v770, %v772
        %v778 = vsel %vm762, %v774, 0.0
        %v779 = vsel %vm763, %v775, 0.0
        %780 = vst [vmem:[#allocation3 + $0x50] sm:$0xff] %v778
        %781 = vst [vmem:[#allocation3 + $0x58] sm:$0xff] %v779
        %v782 = vld [vmem:[#allocation2] sm:$0xff]
        %v783 = vld [vmem:[#allocation2 + $0x8] sm:$0xff]
        %v784 = vld [vmem:[#allocation2 + $0x10] sm:$0xff]
        %s785 = scalar_lea.vmem %s3, 6
        %v786 = vld [vmem:[%s785] ss:$8 sm:$0x3]
        %vm787 = vcmp.ne.s32.totalorder %v786, 0
        %v788 = vsel %vm787, 1, 0
        %v789 = vlaneseq
        %v790 = vshrl.u32 %v789, 7
        %v791 = vsub.s32 0, %v790
        %v792 = vrot.slane %v788, %v791
        %v793 = vlaneseq
        %v794 = vshrl.u32 %v793, 7
        %v795 = vsub.s32 1, %v794
        %v796 = vrot.slane %v788, %v795
        %vm797 = vcmp.eq.s32.totalorder %v792, 1
        %vm798 = vcmp.eq.s32.totalorder %v796, 1
        %802 = vrot.lane.b32.xlu0 %v782, 96
        %v803 = vpop.permute.xlu0 %802
        %804 = vrot.lane.b32.xlu0 %v783, 96
        %v805 = vpop.permute.xlu0 %804
        %806 = vrot.lane.b32.xlu0 %v784, 96
        %v807 = vpop.permute.xlu0 %806
        %vm808 = vcmask 785408
        %v809 = vsel %vm808, %v803, %v805
        %v810 = vsel %vm808, %v805, %v807
        %v813 = vsel %vm797, %v809, 0.0
        %v814 = vsel %vm798, %v810, 0.0
        %815 = vst [vmem:[#allocation3 + $0x60] sm:$0xff] %v813
        %816 = vst [vmem:[#allocation3 + $0x68] sm:$0xff] %v814
        %v817 = vld [vmem:[#allocation2] sm:$0xff]
        %v818 = vld [vmem:[#allocation2 + $0x8] sm:$0xff]
        %v819 = vld [vmem:[#allocation2 + $0x10] sm:$0xff]
        %s820 = scalar_lea.vmem %s3, 7
        %v821 = vld [vmem:[%s820] ss:$8 sm:$0x3]
        %vm822 = vcmp.ne.s32.totalorder %v821, 0
        %v823 = vsel %vm822, 1, 0
        %v824 = vlaneseq
        %v825 = vshrl.u32 %v824, 7
        %v826 = vsub.s32 0, %v825
        %v827 = vrot.slane %v823, %v826
        %v828 = vlaneseq
        %v829 = vshrl.u32 %v828, 7
        %v830 = vsub.s32 1, %v829
        %v831 = vrot.slane %v823, %v830
        %vm832 = vcmp.eq.s32.totalorder %v827, 1
        %vm833 = vcmp.eq.s32.totalorder %v831, 1
        %837 = vrot.lane.b32.xlu0 %v817, 95
        %v838 = vpop.permute.xlu0 %837
        %839 = vrot.lane.b32.xlu0 %v818, 95
        %v840 = vpop.permute.xlu0 %839
        %841 = vrot.lane.b32.xlu0 %v819, 95
        %v842 = vpop.permute.xlu0 %841
        %vm843 = vcmask 777216
        %v844 = vsel %vm843, %v838, %v840
        %v845 = vsel %vm843, %v840, %v842
        %v848 = vsel %vm832, %v844, 0.0
        %v849 = vsel %vm833, %v845, 0.0
        %850 = vst [vmem:[#allocation3 + $0x70] sm:$0xff] %v848
        %851 = vst [vmem:[#allocation3 + $0x78] sm:$0xff] %v849
        %v852 = vld [vmem:[#allocation2] sm:$0xff]
        %v853 = vld [vmem:[#allocation2 + $0x8] sm:$0xff]
        %v854 = vld [vmem:[#allocation2 + $0x10] sm:$0xff]
        %s855 = scalar_lea.vmem %s3, 16
        %v856 = vld [vmem:[%s855] ss:$8 sm:$0x3]
        %vm857 = vcmp.ne.s32.totalorder %v856, 0
        %v858 = vsel %vm857, 1, 0
        %v859 = vlaneseq
        %v860 = vshrl.u32 %v859, 7
        %v861 = vsub.s32 0, %v860
        %v862 = vrot.slane %v858, %v861
        %v863 = vlaneseq
        %v864 = vshrl.u32 %v863, 7
        %v865 = vsub.s32 1, %v864
        %v866 = vrot.slane %v858, %v865
        %vm867 = vcmp.eq.s32.totalorder %v862, 1
        %vm868 = vcmp.eq.s32.totalorder %v866, 1
        %872 = vrot.lane.b32.xlu0 %v852, 94
        %v873 = vpop.permute.xlu0 %872
        %874 = vrot.lane.b32.xlu0 %v853, 94
        %v875 = vpop.permute.xlu0 %874
        %876 = vrot.lane.b32.xlu0 %v854, 94
        %v877 = vpop.permute.xlu0 %876
        %vm878 = vcmask 769024
        %v879 = vsel %vm878, %v873, %v875
        %v880 = vsel %vm878, %v875, %v877
        %v883 = vsel %vm867, %v879, 0.0
        %v884 = vsel %vm868, %v880, 0.0
        %885 = vst [vmem:[#allocation3 + $0x80] sm:$0xff] %v883
        %886 = vst [vmem:[#allocation3 + $0x88] sm:$0xff] %v884
        %v887 = vld [vmem:[%s4] sm:$0xf]
        %v888 = vld [vmem:[#allocation3] sm:$0xff]
        %v889 = vld [vmem:[#allocation3 + $0x8] sm:$0xff]
        %v890 = vld [vmem:[#allocation3 + $0x10] sm:$0xff]
        %v891 = vld [vmem:[#allocation3 + $0x18] sm:$0xff]
        %v892 = vld [vmem:[#allocation3 + $0x20] sm:$0xff]
        %v893 = vld [vmem:[#allocation3 + $0x28] sm:$0xff]
        %v894 = vld [vmem:[#allocation3 + $0x30] sm:$0xff]
        %v895 = vld [vmem:[#allocation3 + $0x38] sm:$0xff]
        %v896 = vld [vmem:[#allocation3 + $0x40] sm:$0xff]
        %v897 = vld [vmem:[#allocation3 + $0x48] sm:$0xff]
        %v898 = vld [vmem:[#allocation3 + $0x50] sm:$0xff]
        %v899 = vld [vmem:[#allocation3 + $0x58] sm:$0xff]
        %v900 = vld [vmem:[#allocation3 + $0x60] sm:$0xff]
        %v901 = vld [vmem:[#allocation3 + $0x68] sm:$0xff]
        %v902 = vld [vmem:[#allocation3 + $0x70] sm:$0xff]
        %v903 = vld [vmem:[#allocation3 + $0x78] sm:$0xff]
        %v904 = vld [vmem:[#allocation3 + $0x80] sm:$0xff]
        %v905 = vld [vmem:[#allocation3 + $0x88] sm:$0xff]
        %v906 = vld [vmem:[%s5] sm:$0xf]
        %908 = vset.pattern.permute.xlu0 0
        %909 = vperm.xlu0 %908, %v906
        %v910 = vpop.permute.xlu0 %909
        %vm912 = vcmask 588800
        %v914 = vsel %vm912, %v887, 0
        %916 = vmatprep.subr.mxu0 %v889
        %917 = vmatpush1.msra.mxu0 %v888
        %918 = vmatprep.subr.mxu0 %v891
        %919 = vmatpush1.msra.mxu0 %v890
        %920 = vmatprep.subr.mxu0 %v893
        %921 = vmatpush1.msra.mxu0 %v892
        %922 = vmatprep.subr.mxu0 %v895
        %923 = vmatpush1.msra.mxu0 %v894
        %924 = vmatprep.subr.mxu0 %v897
        %925 = vmatpush1.msra.mxu0 %v896
        %926 = vmatprep.subr.mxu0 %v899
        %927 = vmatpush1.msra.mxu0 %v898
        %928 = vmatprep.subr.mxu0 %v901
        %929 = vmatpush1.msra.mxu0 %v900
        %930 = vmatprep.subr.mxu0 %v903
        %931 = vmatpush1.msra.mxu0 %v902
        %932 = vmatprep.subr.mxu0 %v905
        %933 = vmatpush1.msra.mxu0 %v904
        %934 = vmatprep.subr.mxu0 0.0
        %935 = vmatpush1.msra.mxu0 0.0
        %936 = vmatprep.subr.mxu0 0.0
        %937 = vmatpush1.msra.mxu0 0.0
        %938 = vmatprep.subr.mxu0 0.0
        %939 = vmatpush1.msra.mxu0 0.0
        %940 = vmatprep.subr.mxu0 0.0
        %941 = vmatpush1.msra.mxu0 0.0
        %942 = vmatprep.subr.mxu0 0.0
        %943 = vmatpush1.msra.mxu0 0.0
        %944 = vmatprep.subr.mxu0 0.0
        %945 = vmatpush1.msra.mxu0 0.0
        %946 = vmatprep.subr.mxu0 0.0
        %947 = vmatpush1.msra.mxu0 0.0
        %948 = vmatprep.subr.mxu0 0.0
        %949 = vmatpush1.msra.mxu0 0.0
        %950 = vmatprep.subr.mxu0 0.0
        %951 = vmatpush1.msra.mxu0 0.0
        %952 = vmatprep.subr.mxu0 0.0
        %953 = vmatpush1.msra.mxu0 0.0
        %954 = vmatprep.subr.mxu0 0.0
        %955 = vmatpush1.msra.mxu0 0.0
        %956 = vmatprep.subr.mxu0 0.0
        %957 = vmatpush1.msra.mxu0 0.0
        %958 = vmatprep.subr.mxu0 0.0
        %959 = vmatpush1.msra.mxu0 0.0
        %960 = vmatprep.subr.mxu0 0.0
        %961 = vmatpush1.msra.mxu0 0.0
        %962 = vmatprep.subr.mxu0 0.0
        %963 = vmatpush1.msra.mxu0 0.0
        %964 = vmatprep.subr.mxu0 0.0
        %965 = vmatpush1.msra.mxu0 0.0
        %966 = vmatprep.subr.mxu0 0.0
        %967 = vmatpush1.msra.mxu0 0.0
        %968 = vmatprep.subr.mxu0 0.0
        %969 = vmatpush1.msra.mxu0 0.0
        %970 = vmatprep.subr.mxu0 0.0
        %971 = vmatpush1.msra.mxu0 0.0
        %972 = vmatprep.subr.mxu0 0.0
        %973 = vmatpush1.msra.mxu0 0.0
        %974 = vmatprep.subr.mxu0 0.0
        %975 = vmatpush1.msra.mxu0 0.0
        %976 = vmatprep.subr.mxu0 0.0
        %977 = vmatpush1.msra.mxu0 0.0
        %978 = vmatprep.subr.mxu0 0.0
        %979 = vmatpush1.msra.mxu0 0.0
        %980 = vmatprep.mubr.f32.mxu0 0.0
        %981 = vmatmul.mubr.f32.gmra.mrb[0].mxu0 %v914
        %v982 = vpop.f32.mrb[0].mxu0
        %v983 = vadd.f32 %v910, %v982
        %v984 = vpop.f32.mrb[0].mxu0
        %v985 = vadd.f32 %v910, %v984
        %986 = vdwg.mxu0
        %v987 = vmax.f32 %v983, 0.0
        %v988 = vmax.f32 %v985, 0.0
        %v989 = vld [vmem:[%s6] sm:$0xf]
        %991 = vset.pattern.permute.xlu0 0
        %992 = vperm.xlu0 %991, %v989
        %v993 = vpop.permute.xlu0 %992
        %v995 = vmul.f32 %v987, %v993
        %v996 = vmul.f32 %v988, %v993
        %v997 = vld [vmem:[%s7] sm:$0xf]
        %999 = vset.pattern.permute.xlu0 0
        %1000 = vperm.xlu0 %999, %v997
        %v1001 = vpop.permute.xlu0 %1000
        %v1003 = vadd.f32 %v995, %v1001
        %v1004 = vadd.f32 %v996, %v1001
        %v1007 = vcombine.low %v1003, %v1004
        %1008 = vrot.lane.b32.xlu0 %v1007, 17
        %v1009 = vpop.permute.xlu0 %1008
        %v1010 = vrot.slane %v1009, 4
        %v1011 = vsel %vm561, %v1010, %v1009
        %vm1014 = vcmask 1047556
        %vm1015 = vmor %vm1014, %vm566
        %1016 = vst.msk [vmem:[#allocation4] sm:$0xff] %vm1015, %v1011
        %1017 = vst.msk [vmem:[#allocation4 + $0x8] sm:$0xf] %vm569, %v1010
        %v1018 = vld [vmem:[#allocation4] sm:$0xff]
        %v1019 = vld [vmem:[%s3] ss:$8 sm:$0x3]
        %vm1020 = vcmp.ne.s32.totalorder %v1019, 0
        %v1021 = vsel %vm1020, 1, 0
        %v1022 = vlaneseq
        %v1023 = vshrl.u32 %v1022, 7
        %v1024 = vsub.s32 0, %v1023
        %v1025 = vrot.slane %v1021, %v1024
        %v1026 = vlaneseq
        %v1027 = vshrl.u32 %v1026, 7
        %v1028 = vsub.s32 1, %v1027
        %v1029 = vrot.slane %v1021, %v1028
        %vm1030 = vcmp.eq.s32.totalorder %v1025, 1
        %vm1031 = vcmp.eq.s32.totalorder %v1029, 1
        %v1033 = vcombine.high %v1018, %v1018
        %v1035 = vsel %vm1030, %v1018, 0.0
        %v1036 = vsel %vm1031, %v1033, 0.0
        %1037 = vst [vmem:[#allocation5] sm:$0xf] %v1035
        %1038 = vst [vmem:[#allocation5 + $0x8] sm:$0xf] %v1036
        %v1039 = vld [vmem:[#allocation4] sm:$0xff]
        %v1040 = vld [vmem:[#allocation4 + $0x8] sm:$0xf]
        %v1041 = vld [vmem:[%s610] ss:$8 sm:$0x3]
        %vm1042 = vcmp.ne.s32.totalorder %v1041, 0
        %v1043 = vsel %vm1042, 1, 0
        %v1044 = vlaneseq
        %v1045 = vshrl.u32 %v1044, 7
        %v1046 = vsub.s32 0, %v1045
        %v1047 = vrot.slane %v1043, %v1046
        %v1048 = vlaneseq
        %v1049 = vshrl.u32 %v1048, 7
        %v1050 = vsub.s32 1, %v1049
        %v1051 = vrot.slane %v1043, %v1050
        %vm1052 = vcmp.eq.s32.totalorder %v1047, 1
        %vm1053 = vcmp.eq.s32.totalorder %v1051, 1
        %v1056 = vcombine.high %v1039, %v1039
        %1057 = vrot.lane.b32.xlu0 %v1039, 127
        %v1058 = vpop.permute.xlu0 %1057
        %1059 = vrot.lane.b32.xlu0 %v1056, 127
        %v1060 = vpop.permute.xlu0 %1059
        %1061 = vrot.lane.b32.xlu0 %v1040, 127
        %v1062 = vpop.permute.xlu0 %1061
        %v1063 = vsel %vm633, %v1058, %v1060
        %v1064 = vsel %vm633, %v1060, %v1062
        %v1067 = vsel %vm1052, %v1063, 0.0
        %v1068 = vsel %vm1053, %v1064, 0.0
        %v1071 = vrot.slane %v1067, 4
        %v1072 = vrot.slane %v1068, 4
        %1075 = vst [vmem:[#allocation5] sm:$0xf0] %v1071
        %1076 = vst [vmem:[#allocation5 + $0x8] sm:$0xf0] %v1072
        %v1077 = vld [vmem:[#allocation4] sm:$0xff]
        %v1078 = vld [vmem:[#allocation4 + $0x8] sm:$0xf]
        %v1079 = vld [vmem:[%s645] ss:$8 sm:$0x3]
        %vm1080 = vcmp.ne.s32.totalorder %v1079, 0
        %v1081 = vsel %vm1080, 1, 0
        %v1082 = vlaneseq
        %v1083 = vshrl.u32 %v1082, 7
        %v1084 = vsub.s32 0, %v1083
        %v1085 = vrot.slane %v1081, %v1084
        %v1086 = vlaneseq
        %v1087 = vshrl.u32 %v1086, 7
        %v1088 = vsub.s32 1, %v1087
        %v1089 = vrot.slane %v1081, %v1088
        %vm1090 = vcmp.eq.s32.totalorder %v1085, 1
        %vm1091 = vcmp.eq.s32.totalorder %v1089, 1
        %v1094 = vcombine.high %v1077, %v1077
        %1095 = vrot.lane.b32.xlu0 %v1077, 126
        %v1096 = vpop.permute.xlu0 %1095
        %1097 = vrot.lane.b32.xlu0 %v1094, 126
        %v1098 = vpop.permute.xlu0 %1097
        %1099 = vrot.lane.b32.xlu0 %v1078, 126
        %v1100 = vpop.permute.xlu0 %1099
        %v1101 = vsel %vm668, %v1096, %v1098
        %v1102 = vsel %vm668, %v1098, %v1100
        %v1105 = vsel %vm1090, %v1101, 0.0
        %v1106 = vsel %vm1091, %v1102, 0.0
        %1107 = vst [vmem:[#allocation5 + $0x10] sm:$0xf] %v1105
        %1108 = vst [vmem:[#allocation5 + $0x18] sm:$0xf] %v1106
        %v1109 = vld [vmem:[#allocation4] sm:$0xff]
        %v1110 = vld [vmem:[#allocation4 + $0x8] sm:$0xf]
        %v1111 = vld [vmem:[%s680] ss:$8 sm:$0x3]
        %vm1112 = vcmp.ne.s32.totalorder %v1111, 0
        %v1113 = vsel %vm1112, 1, 0
        %v1114 = vlaneseq
        %v1115 = vshrl.u32 %v1114, 7
        %v1116 = vsub.s32 0, %v1115
        %v1117 = vrot.slane %v1113, %v1116
        %v1118 = vlaneseq
        %v1119 = vshrl.u32 %v1118, 7
        %v1120 = vsub.s32 1, %v1119
        %v1121 = vrot.slane %v1113, %v1120
        %vm1122 = vcmp.eq.s32.totalorder %v1117, 1
        %vm1123 = vcmp.eq.s32.totalorder %v1121, 1
        %v1126 = vcombine.high %v1109, %v1109
        %1127 = vrot.lane.b32.xlu0 %v1109, 112
        %v1128 = vpop.permute.xlu0 %1127
        %1129 = vrot.lane.b32.xlu0 %v1126, 112
        %v1130 = vpop.permute.xlu0 %1129
        %1131 = vrot.lane.b32.xlu0 %v1110, 112
        %v1132 = vpop.permute.xlu0 %1131
        %v1133 = vsel %vm703, %v1128, %v1130
        %v1134 = vsel %vm703, %v1130, %v1132
        %v1137 = vsel %vm1122, %v1133, 0.0
        %v1138 = vsel %vm1123, %v1134, 0.0
        %v1141 = vrot.slane %v1137, 4
        %v1142 = vrot.slane %v1138, 4
        %1145 = vst [vmem:[#allocation5 + $0x10] sm:$0xf0] %v1141
        %1146 = vst [vmem:[#allocation5 + $0x18] sm:$0xf0] %v1142
        %v1147 = vld [vmem:[#allocation4] sm:$0xff]
        %v1148 = vld [vmem:[#allocation4 + $0x8] sm:$0xf]
        %v1149 = vld [vmem:[%s715] ss:$8 sm:$0x3]
        %vm1150 = vcmp.ne.s32.totalorder %v1149, 0
        %v1151 = vsel %vm1150, 1, 0
        %v1152 = vlaneseq
        %v1153 = vshrl.u32 %v1152, 7
        %v1154 = vsub.s32 0, %v1153
        %v1155 = vrot.slane %v1151, %v1154
        %v1156 = vlaneseq
        %v1157 = vshrl.u32 %v1156, 7
        %v1158 = vsub.s32 1, %v1157
        %v1159 = vrot.slane %v1151, %v1158
        %vm1160 = vcmp.eq.s32.totalorder %v1155, 1
        %vm1161 = vcmp.eq.s32.totalorder %v1159, 1
        %v1164 = vcombine.high %v1147, %v1147
        %1165 = vrot.lane.b32.xlu0 %v1147, 111
        %v1166 = vpop.permute.xlu0 %1165
        %1167 = vrot.lane.b32.xlu0 %v1164, 111
        %v1168 = vpop.permute.xlu0 %1167
        %1169 = vrot.lane.b32.xlu0 %v1148, 111
        %v1170 = vpop.permute.xlu0 %1169
        %v1171 = vsel %vm738, %v1166, %v1168
        %v1172 = vsel %vm738, %v1168, %v1170
        %v1175 = vsel %vm1160, %v1171, 0.0
        %v1176 = vsel %vm1161, %v1172, 0.0
        %1177 = vst [vmem:[#allocation5 + $0x20] sm:$0xf] %v1175
        %1178 = vst [vmem:[#allocation5 + $0x28] sm:$0xf] %v1176
        %v1179 = vld [vmem:[#allocation4] sm:$0xff]
        %v1180 = vld [vmem:[#allocation4 + $0x8] sm:$0xf]
        %v1181 = vld [vmem:[%s750] ss:$8 sm:$0x3]
        %vm1182 = vcmp.ne.s32.totalorder %v1181, 0
        %v1183 = vsel %vm1182, 1, 0
        %v1184 = vlaneseq
        %v1185 = vshrl.u32 %v1184, 7
        %v1186 = vsub.s32 0, %v1185
        %v1187 = vrot.slane %v1183, %v1186
        %v1188 = vlaneseq
        %v1189 = vshrl.u32 %v1188, 7
        %v1190 = vsub.s32 1, %v1189
        %v1191 = vrot.slane %v1183, %v1190
        %vm1192 = vcmp.eq.s32.totalorder %v1187, 1
        %vm1193 = vcmp.eq.s32.totalorder %v1191, 1
        %v1196 = vcombine.high %v1179, %v1179
        %1197 = vrot.lane.b32.xlu0 %v1179, 110
        %v1198 = vpop.permute.xlu0 %1197
        %1199 = vrot.lane.b32.xlu0 %v1196, 110
        %v1200 = vpop.permute.xlu0 %1199
        %1201 = vrot.lane.b32.xlu0 %v1180, 110
        %v1202 = vpop.permute.xlu0 %1201
        %v1203 = vsel %vm773, %v1198, %v1200
        %v1204 = vsel %vm773, %v1200, %v1202
        %v1207 = vsel %vm1192, %v1203, 0.0
        %v1208 = vsel %vm1193, %v1204, 0.0
        %v1211 = vrot.slane %v1207, 4
        %v1212 = vrot.slane %v1208, 4
        %1215 = vst [vmem:[#allocation5 + $0x20] sm:$0xf0] %v1211
        %1216 = vst [vmem:[#allocation5 + $0x28] sm:$0xf0] %v1212
        %v1217 = vld [vmem:[#allocation4] sm:$0xff]
        %v1218 = vld [vmem:[#allocation4 + $0x8] sm:$0xf]
        %v1219 = vld [vmem:[%s785] ss:$8 sm:$0x3]
        %vm1220 = vcmp.ne.s32.totalorder %v1219, 0
        %v1221 = vsel %vm1220, 1, 0
        %v1222 = vlaneseq
        %v1223 = vshrl.u32 %v1222, 7
        %v1224 = vsub.s32 0, %v1223
        %v1225 = vrot.slane %v1221, %v1224
        %v1226 = vlaneseq
        %v1227 = vshrl.u32 %v1226, 7
        %v1228 = vsub.s32 1, %v1227
        %v1229 = vrot.slane %v1221, %v1228
        %vm1230 = vcmp.eq.s32.totalorder %v1225, 1
        %vm1231 = vcmp.eq.s32.totalorder %v1229, 1
        %v1234 = vcombine.high %v1217, %v1217
        %1235 = vrot.lane.b32.xlu0 %v1217, 96
        %v1236 = vpop.permute.xlu0 %1235
        %1237 = vrot.lane.b32.xlu0 %v1234, 96
        %v1238 = vpop.permute.xlu0 %1237
        %1239 = vrot.lane.b32.xlu0 %v1218, 96
        %v1240 = vpop.permute.xlu0 %1239
        %v1241 = vsel %vm808, %v1236, %v1238
        %v1242 = vsel %vm808, %v1238, %v1240
        %v1245 = vsel %vm1230, %v1241, 0.0
        %v1246 = vsel %vm1231, %v1242, 0.0
        %1247 = vst [vmem:[#allocation5 + $0x30] sm:$0xf] %v1245
        %1248 = vst [vmem:[#allocation5 + $0x38] sm:$0xf] %v1246
        %v1249 = vld [vmem:[#allocation4] sm:$0xff]
        %v1250 = vld [vmem:[#allocation4 + $0x8] sm:$0xf]
        %v1251 = vld [vmem:[%s820] ss:$8 sm:$0x3]
        %vm1252 = vcmp.ne.s32.totalorder %v1251, 0
        %v1253 = vsel %vm1252, 1, 0
        %v1254 = vlaneseq
        %v1255 = vshrl.u32 %v1254, 7
        %v1256 = vsub.s32 0, %v1255
        %v1257 = vrot.slane %v1253, %v1256
        %v1258 = vlaneseq
        %v1259 = vshrl.u32 %v1258, 7
        %v1260 = vsub.s32 1, %v1259
        %v1261 = vrot.slane %v1253, %v1260
        %vm1262 = vcmp.eq.s32.totalorder %v1257, 1
        %vm1263 = vcmp.eq.s32.totalorder %v1261, 1
        %v1266 = vcombine.high %v1249, %v1249
        %1267 = vrot.lane.b32.xlu0 %v1249, 95
        %v1268 = vpop.permute.xlu0 %1267
        %1269 = vrot.lane.b32.xlu0 %v1266, 95
        %v1270 = vpop.permute.xlu0 %1269
        %1271 = vrot.lane.b32.xlu0 %v1250, 95
        %v1272 = vpop.permute.xlu0 %1271
        %v1273 = vsel %vm843, %v1268, %v1270
        %v1274 = vsel %vm843, %v1270, %v1272
        %v1277 = vsel %vm1262, %v1273, 0.0
        %v1278 = vsel %vm1263, %v1274, 0.0
        %v1281 = vrot.slane %v1277, 4
        %v1282 = vrot.slane %v1278, 4
        %1285 = vst [vmem:[#allocation5 + $0x30] sm:$0xf0] %v1281
        %1286 = vst [vmem:[#allocation5 + $0x38] sm:$0xf0] %v1282
        %v1287 = vld [vmem:[#allocation4] sm:$0xff]
        %v1288 = vld [vmem:[#allocation4 + $0x8] sm:$0xf]
        %v1289 = vld [vmem:[%s855] ss:$8 sm:$0x3]
        %vm1290 = vcmp.ne.s32.totalorder %v1289, 0
        %v1291 = vsel %vm1290, 1, 0
        %v1292 = vlaneseq
        %v1293 = vshrl.u32 %v1292, 7
        %v1294 = vsub.s32 0, %v1293
        %v1295 = vrot.slane %v1291, %v1294
        %v1296 = vlaneseq
        %v1297 = vshrl.u32 %v1296, 7
        %v1298 = vsub.s32 1, %v1297
        %v1299 = vrot.slane %v1291, %v1298
        %vm1300 = vcmp.eq.s32.totalorder %v1295, 1
        %vm1301 = vcmp.eq.s32.totalorder %v1299, 1
        %v1304 = vcombine.high %v1287, %v1287
        %1305 = vrot.lane.b32.xlu0 %v1287, 94
        %v1306 = vpop.permute.xlu0 %1305
        %1307 = vrot.lane.b32.xlu0 %v1304, 94
        %v1308 = vpop.permute.xlu0 %1307
        %1309 = vrot.lane.b32.xlu0 %v1288, 94
        %v1310 = vpop.permute.xlu0 %1309
        %v1311 = vsel %vm878, %v1306, %v1308
        %v1312 = vsel %vm878, %v1308, %v1310
        %v1315 = vsel %vm1300, %v1311, 0.0
        %v1316 = vsel %vm1301, %v1312, 0.0
        %1317 = vst [vmem:[#allocation5 + $0x40] sm:$0xf] %v1315
        %1318 = vst [vmem:[#allocation5 + $0x48] sm:$0xf] %v1316
        %v1319 = vld [vmem:[%s8] sm:$0xf]
        %v1320 = vld [vmem:[#allocation5] sm:$0xff]
        %v1321 = vld [vmem:[#allocation5 + $0x8] sm:$0xff]
        %v1322 = vld [vmem:[#allocation5 + $0x10] sm:$0xff]
        %v1323 = vld [vmem:[#allocation5 + $0x18] sm:$0xff]
        %v1324 = vld [vmem:[#allocation5 + $0x20] sm:$0xff]
        %v1325 = vld [vmem:[#allocation5 + $0x28] sm:$0xff]
        %v1326 = vld [vmem:[#allocation5 + $0x30] sm:$0xff]
        %v1327 = vld [vmem:[#allocation5 + $0x38] sm:$0xff]
        %v1328 = vld [vmem:[#allocation5 + $0x40] sm:$0xf]
        %v1329 = vld [vmem:[#allocation5 + $0x48] sm:$0xf]
        %v1330 = vld [vmem:[%s9] sm:$0xf]
        %1332 = vset.pattern.permute.xlu0 0
        %1333 = vperm.xlu0 %1332, %v1330
        %v1334 = vpop.permute.xlu0 %1333
        %vm1336 = vcmask 293888
        %v1338 = vsel %vm1336, %v1319, 0
        %vm1340 = vcmask 1043456
        %v1342 = vsel %vm1340, %v1328, 0
        %v1345 = vsel %vm1340, %v1329, 0
        %1347 = vmatprep.subr.mxu0 %v1321
        %1348 = vmatpush1.msra.mxu0 %v1320
        %1349 = vmatprep.subr.mxu0 %v1323
        %1350 = vmatpush1.msra.mxu0 %v1322
        %1351 = vmatprep.subr.mxu0 %v1325
        %1352 = vmatpush1.msra.mxu0 %v1324
        %1353 = vmatprep.subr.mxu0 %v1327
        %1354 = vmatpush1.msra.mxu0 %v1326
        %1355 = vmatprep.subr.mxu0 %v1345
        %1356 = vmatpush1.msra.mxu0 %v1342
        %1357 = vmatprep.subr.mxu0 0.0
        %1358 = vmatpush1.msra.mxu0 0.0
        %1359 = vmatprep.subr.mxu0 0.0
        %1360 = vmatpush1.msra.mxu0 0.0
        %1361 = vmatprep.subr.mxu0 0.0
        %1362 = vmatpush1.msra.mxu0 0.0
        %1363 = vmatprep.subr.mxu0 0.0
        %1364 = vmatpush1.msra.mxu0 0.0
        %1365 = vmatprep.subr.mxu0 0.0
        %1366 = vmatpush1.msra.mxu0 0.0
        %1367 = vmatprep.subr.mxu0 0.0
        %1368 = vmatpush1.msra.mxu0 0.0
        %1369 = vmatprep.subr.mxu0 0.0
        %1370 = vmatpush1.msra.mxu0 0.0
        %1371 = vmatprep.subr.mxu0 0.0
        %1372 = vmatpush1.msra.mxu0 0.0
        %1373 = vmatprep.subr.mxu0 0.0
        %1374 = vmatpush1.msra.mxu0 0.0
        %1375 = vmatprep.subr.mxu0 0.0
        %1376 = vmatpush1.msra.mxu0 0.0
        %1377 = vmatprep.subr.mxu0 0.0
        %1378 = vmatpush1.msra.mxu0 0.0
        %1379 = vmatprep.subr.mxu0 0.0
        %1380 = vmatpush1.msra.mxu0 0.0
        %1381 = vmatprep.subr.mxu0 0.0
        %1382 = vmatpush1.msra.mxu0 0.0
        %1383 = vmatprep.subr.mxu0 0.0
        %1384 = vmatpush1.msra.mxu0 0.0
        %1385 = vmatprep.subr.mxu0 0.0
        %1386 = vmatpush1.msra.mxu0 0.0
        %1387 = vmatprep.subr.mxu0 0.0
        %1388 = vmatpush1.msra.mxu0 0.0
        %1389 = vmatprep.subr.mxu0 0.0
        %1390 = vmatpush1.msra.mxu0 0.0
        %1391 = vmatprep.subr.mxu0 0.0
        %1392 = vmatpush1.msra.mxu0 0.0
        %1393 = vmatprep.subr.mxu0 0.0
        %1394 = vmatpush1.msra.mxu0 0.0
        %1395 = vmatprep.subr.mxu0 0.0
        %1396 = vmatpush1.msra.mxu0 0.0
        %1397 = vmatprep.subr.mxu0 0.0
        %1398 = vmatpush1.msra.mxu0 0.0
        %1399 = vmatprep.subr.mxu0 0.0
        %1400 = vmatpush1.msra.mxu0 0.0
        %1401 = vmatprep.subr.mxu0 0.0
        %1402 = vmatpush1.msra.mxu0 0.0
        %1403 = vmatprep.subr.mxu0 0.0
        %1404 = vmatpush1.msra.mxu0 0.0
        %1405 = vmatprep.subr.mxu0 0.0
        %1406 = vmatpush1.msra.mxu0 0.0
        %1407 = vmatprep.subr.mxu0 0.0
        %1408 = vmatpush1.msra.mxu0 0.0
        %1409 = vmatprep.subr.mxu0 0.0
        %1410 = vmatpush1.msra.mxu0 0.0
        %1411 = vmatprep.mubr.f32.mxu0 0.0
        %1412 = vmatmul.mubr.f32.gmra.mrb[0].mxu0 %v1338
        %v1413 = vpop.f32.mrb[0].mxu0
        %v1414 = vadd.f32 %v1334, %v1413
        %v1415 = vpop.f32.mrb[0].mxu0
        %v1416 = vadd.f32 %v1334, %v1415
        %1417 = vdwg.mxu0
        %v1418 = vmax.f32 %v1414, 0.0
        %v1419 = vmax.f32 %v1416, 0.0
        %v1420 = vld [vmem:[%s10] sm:$0xf]
        %1422 = vset.pattern.permute.xlu0 0
        %1423 = vperm.xlu0 %1422, %v1420
        %v1424 = vpop.permute.xlu0 %1423
        %v1426 = vmul.f32 %v1418, %v1424
        %v1427 = vmul.f32 %v1419, %v1424
        %v1428 = vld [vmem:[%s11] sm:$0xf]
        %1430 = vset.pattern.permute.xlu0 0
        %1431 = vperm.xlu0 %1430, %v1428
        %v1432 = vpop.permute.xlu0 %1431
        %v1434 = vadd.f32 %v1426, %v1432
        %v1435 = vadd.f32 %v1427, %v1432
        %v1438 = vcombine.low %v1434, %v1435
        %1440 = vst [vmem:[%s457] sm:$0xff] %v1438
        %s1441 = sand.u32 %s300, 1
        %s1442 = scalar_lea.sflag [#allocation8], %s1441
        %s1443 = sand.u32 %s300, 1
        %s1444 = smul.addr %s1443, 8
        %s1445 = scalar_lea.vmem [#allocation11], %s1444
        // Predicated region
        $region77: #{tpu_custom_call.1} parent=67 // pred_check
          %p1446 = pneg %p310
        $region78: #{tpu_custom_call.1} parent=67 // pred_check_branch
          %1448 = sbr.rel (%p1446) target = $region80
        $region79: #{tpu_custom_call.1} parent=67 // pred_region
          %s1450 = ssub.s32 128, 128
          %1451 = vsyncadd %s1442, %s1450
          %s1452 = smul.addr %s30, 2
          %s1453 = smul.addr %s1452, 64
          %s1454 = scalar_lea.hbm %s12, %s1453
          %s1456 = sshll.u32 %s1445, 4
          %s1457 = int_to_ptr.vmem [resolvable:$true] %s1456
          %1459 = dma.vmem_to_hbm [thread:$0]  %s1457, 128, %s1454, %s1442
        $region80: #{tpu_custom_call.1} parent=67 // pred_fallthru
          _
      $region68: #{tpu_custom_call.1} parent=5 // pred_fallthru
        _
      %p1460 = scmp.le.s32.totalorder 2, %s25
      // Predicated region
      $region81: #{tpu_custom_call.1} parent=5 // pred_check
        %p1461 = pneg %p1460
      $region82: #{tpu_custom_call.1} parent=5 // pred_check_branch
        %1463 = sbr.rel (%p1461) target = $region84
      $region83: #{tpu_custom_call.1} parent=5 // pred_region
        %s1464 = ssub.s32 %s25, 2
        // Predicated region
        $region85: #{tpu_custom_call.1} parent=83 // pred_check
          %p1465 = pneg %p316
        $region86: #{tpu_custom_call.1} parent=83 // pred_check_branch
          %1467 = sbr.rel (%p1465) target = $region88
        $region87: #{tpu_custom_call.1} parent=83 // pred_region
          %s1468 = sand.u32 %s301, 1
          %s1469 = scalar_lea.sflag [#allocation8], %s1468
          %s1470 = sand.u32 %s301, 1
          %s1471 = smul.addr %s1470, 8
          %s1472 = scalar_lea.vmem [#allocation11], %s1471
          %1473 = dma.done %s1469, 128
        $region88: #{tpu_custom_call.1} parent=83 // pred_fallthru
          _
      $region84: #{tpu_custom_call.1} parent=5 // pred_fallthru
        _
    $region6: #{tpu_custom_call.1} parent=1 // loop_footer
      %s29 = sadd.s32 1, %s25
    $region7: #{tpu_custom_call.1} parent=1 // loop_footer_branch
      %24 = sbr.rel target = $region3
    $region8: #{tpu_custom_call.1} parent=1 // loop_exit
      _
    %1474 = vsyncpa [#allocation7], 1
    %s1475 = scalar_lea.sflag [#allocation7], 1
    %1476 = vsyncpa %s1475, 1
    %1477 = vsyncpa [#allocation10], 1
    %1478 = vsyncpa [#allocation8], 1
    %s1479 = scalar_lea.sflag [#allocation8], 1
    %1480 = vsyncpa %s1479, 1

</llo_original>
